<compile_context>
chip_gen: v7x
topology: tpu7x:2x2x1
jax: 0.10.0
libtpu: 0.0.40
codegen_flags: <defaults>
</compile_context>

<pallas_src>
import jax
import jax.numpy as jnp
from jax import lax
from jax.experimental import pallas as pl
from jax.experimental.pallas import tpu as pltpu


# ----------------------------------------------------------------------------
# Fused kernel: GCN + ReLU + edge gather + LSTM recurrence + Linear
# ----------------------------------------------------------------------------
def edge_gcn_lstm_kernel(a_ref, x_ref, gcn_wb_ref, idx_ref, ea_ref,
                         lstm_w_ref, lin_wb_ref, o_ref):
    n = a_ref.shape[0]                 # nodes
    e = ea_ref.shape[0]                # edges == LSTM sequence length
    hdim = gcn_wb_ref.shape[1]         # GCN hidden channels
    l4 = lstm_w_ref.shape[1]           # 4 * lstm hidden (packed gate width)
    l = l4 // 4                        # lstm hidden size
    din = 2 * hdim + ea_ref.shape[1]   # LSTM input size

    # --- Stage 1: GCNConv (dense normalized adjacency) + bias + ReLU --------
    w_gcn = gcn_wb_ref[0:1, :]                                      # [1, H]
    b_gcn = gcn_wb_ref[1:2, :]                                      # [1, H]
    xw = x_ref[...] * w_gcn                                         # [N,1]*[1,H] -> [N,H]
    h = jnp.dot(a_ref[...], xw, preferred_element_type=jnp.float32) + b_gcn
    h = jnp.maximum(h, 0.0)                                         # [N, H]
    # TODO(synk): dropout is identity (inference only); training-mode PRNG mask
    #             not implemented.

    # --- Stage 2: sender / receiver gather as one-hot matmuls ---------------
    # (keeps h in-register, avoids dynamic vector indexing; MXU is idle anyway)
    node_ids = lax.broadcasted_iota(jnp.int32, (e, n), 1)           # [E, N]
    sel_src = (node_ids == idx_ref[:, 0:1]).astype(jnp.float32)     # [E, N] one-hot
    sel_dst = (node_ids == idx_ref[:, 1:2]).astype(jnp.float32)
    h_src = jnp.dot(sel_src, h, preferred_element_type=jnp.float32)  # [E, H]
    h_dst = jnp.dot(sel_dst, h, preferred_element_type=jnp.float32)  # [E, H]

    # --- Stage 3: hoisted LSTM input projection, gates packed [i|f|g|o] -----
    # Packed LSTM slab layout (rows): [whh | wih_src | wih_dst | wih_edge | b]
    whh = lstm_w_ref[0:l, :]                                        # [L, 4L] (aligned)
    wih_s = lstm_w_ref[l:l + hdim, :]                               # [H, 4L]
    wih_d = lstm_w_ref[l + hdim:l + 2 * hdim, :]                    # [H, 4L]
    wih_e = lstm_w_ref[l + 2 * hdim:l + din, :]                     # [3, 4L]
    b_lstm = lstm_w_ref[l + din:l + din + 1, :]                     # [1, 4L]

    # xw_all[t] = ef[t] @ W_ih^T + (b_ih + b_hh), lane width = 4L = 128.
    xw_all = (jnp.dot(h_src, wih_s, preferred_element_type=jnp.float32)
              + jnp.dot(h_dst, wih_d, preferred_element_type=jnp.float32)
              + jnp.dot(ea_ref[...], wih_e, preferred_element_type=jnp.float32)
              + b_lstm)                                             # [E, 4L]

    def sigmoid(v):
        # Exact tanh form: one EUP push per gate, no divide / approx recip.
        return 0.5 * jnp.tanh(0.5 * v) + 0.5

    h_t = jnp.zeros((1, l), jnp.float32)
    c_t = jnp.zeros((1, l), jnp.float32)
    hs = []
    # E is small and static: fully unroll the recurrence; h_t stays in vregs.
    for t in range(e):
        gates = (xw_all[t:t + 1, :]
                 + jnp.dot(h_t, whh, preferred_element_type=jnp.float32))   # [1, 4L]
        i_g = sigmoid(gates[:, 0:l])
        f_g = sigmoid(gates[:, l:2 * l])
        g_g = jnp.tanh(gates[:, 2 * l:3 * l])
        o_g = sigmoid(gates[:, 3 * l:4 * l])
        c_t = f_g * c_t + i_g * g_g
        h_t = o_g * jnp.tanh(c_t)
        hs.append(h_t)

    hs_all = jnp.concatenate(hs, axis=0)                            # [E, L] in vregs

    # --- Stage 4: final Linear applied once, single lane-dense store --------
    # out[o, e] = sum_l wlin[o, l] * hs[e, l]  (E on the lane axis)
    w_lin = lin_wb_ref[:, 0:l]                                      # [O, L]
    b_lin = lin_wb_ref[:, l:l + 1]                                  # [O, 1]
    out = lax.dot_general(w_lin, hs_all,
                          dimension_numbers=(((1,), (1,)), ((), ())),
                          preferred_element_type=jnp.float32)       # [O, E]
    o_ref[...] = (out + b_lin).astype(o_ref.dtype)


# ----------------------------------------------------------------------------
# Forward wrapper (dense normalized adjacency + weight packing in plain JAX)
# ----------------------------------------------------------------------------
def edge_gcn_lstm_forward(x, edge_index, edge_attr, raw):
    n = x.shape[0]
    e = edge_attr.shape[0]
    src = edge_index[0].astype(jnp.int32)
    dst = edge_index[1].astype(jnp.int32)

    # PyG GCNConv normalization: A_hat = A + I (A[dst, src] = 1 per edge),
    # deg = in-degree of A_hat, A_norm = D^{-1/2} A_hat D^{-1/2}
    a = jnp.zeros((n, n), jnp.float32).at[dst, src].add(1.0)
    a = a + jnp.eye(n, dtype=jnp.float32)
    deg = a.sum(axis=1)
    dinv = jnp.where(deg > 0, 1.0 / jnp.sqrt(deg), 0.0)
    a_norm = dinv[:, None] * a * dinv[None, :]

    o = raw["w_lin"].shape[0]
    l = raw["w_hh"].shape[1]

    # ---- pack the small parameter tensors into a few lane-dense slabs ------
    gcn_wb = jnp.concatenate(
        [raw["w_gcn"], raw["b_gcn"].reshape(1, -1)], axis=0)        # [2, H]
    edge_idx = jnp.stack([src, dst], axis=1)                        # [E, 2] int32
    lstm_w = jnp.concatenate(
        [raw["w_hh"].T,                                             # [L, 4L]
         raw["w_ih"].T,                                             # [DIN, 4L]
         (raw["b_ih"] + raw["b_hh"]).reshape(1, -1)], axis=0)       # [1, 4L]
    lin_wb = jnp.concatenate(
        [raw["w_lin"], raw["b_lin"].reshape(o, 1)], axis=1)         # [O, L+1]

    out2d = pl.pallas_call(
        edge_gcn_lstm_kernel,
        out_shape=jax.ShapeDtypeStruct((o, e), jnp.float32),
        in_specs=[pl.BlockSpec(memory_space=pltpu.MemorySpace.VMEM)] * 7,
        out_specs=pl.BlockSpec(memory_space=pltpu.MemorySpace.VMEM),
    )(a_norm, x, gcn_wb, edge_idx, edge_attr, lstm_w, lin_wb)

    # PyTorch `out.view(-1)` on an [E, O] result -> row-major index e*O + o.
    return out2d.T.reshape(-1)


# ----------------------------------------------------------------------------
# Pure-JAX reference (PyTorch conventions) for a sanity check.
# ----------------------------------------------------------------------------
def reference_forward(x, edge_index, edge_attr, raw):
    n = x.shape[0]
    src, dst = edge_index[0], edge_index[1]
    a = jnp.zeros((n, n), jnp.float32).at[dst, src].add(1.0)
    a = a + jnp.eye(n, dtype=jnp.float32)
    deg = a.sum(axis=1)
    dinv = jnp.where(deg > 0, 1.0 / jnp.sqrt(deg), 0.0)
    a_norm = dinv[:, None] * a * dinv[None, :]

    h = jnp.maximum(a_norm @ (x @ raw["w_gcn"]) + raw["b_gcn"], 0.0)
    ef = jnp.concatenate([h[src], h[dst], edge_attr], axis=1)

    L = raw["w_hh"].shape[1]

    def step(carry, x_t):
        hh, cc = carry
        gates = x_t @ raw["w_ih"].T + hh @ raw["w_hh"].T + raw["b_ih"] + raw["b_hh"]
        i_g = jax.nn.sigmoid(gates[0:L])
        f_g = jax.nn.sigmoid(gates[L:2 * L])
        g_g = jnp.tanh(gates[2 * L:3 * L])
        o_g = jax.nn.sigmoid(gates[3 * L:4 * L])
        cc = f_g * cc + i_g * g_g
        hh = o_g * jnp.tanh(cc)
        return (hh, cc), hh

    init = (jnp.zeros((L,), jnp.float32), jnp.zeros((L,), jnp.float32))
    _, hs = lax.scan(step, init, ef)
    out = hs @ raw["w_lin"].T + raw["b_lin"]
    return out.reshape(-1)


# ----------------------------------------------------------------------------
if __name__ == "__main__":
    # Model hyper-parameters (small, consistent with the module's __init__)
    H = 8        # hidden_channels
    L = 32       # lstm_hidden_channels  (4L = 128 -> lane-dense packed gates)
    O = 1        # out_channels
    DIN = 2 * H + 3
    N, E = 16, 8  # nodes, edges (LSTM sequence length = E)

    key = jax.random.PRNGKey(0)
    ks = jax.random.split(key, 12)

    # ------- deterministic synthetic parameters (PyTorch shapes) -------
    raw = dict(
        w_gcn=jax.random.normal(ks[0], (1, H), jnp.float32) * 0.1,       # GCN lin weight
        b_gcn=jax.random.normal(ks[1], (H,), jnp.float32) * 0.1,         # GCN bias
        w_ih=jax.random.normal(ks[2], (4 * L, DIN), jnp.float32) * 0.1,  # LSTM weight_ih_l0
        w_hh=jax.random.normal(ks[3], (4 * L, L), jnp.float32) * 0.1,    # LSTM weight_hh_l0
        b_ih=jax.random.normal(ks[4], (4 * L,), jnp.float32) * 0.1,
        b_hh=jax.random.normal(ks[5], (4 * L,), jnp.float32) * 0.1,
        w_lin=jax.random.normal(ks[6], (O, L), jnp.float32) * 0.1,       # Linear weight
        b_lin=jax.random.normal(ks[7], (O,), jnp.float32) * 0.1,
    )

    # ------- deterministic inputs -------
    x = jax.random.normal(ks[8], (N, 1), jnp.float32)
    src = jax.random.randint(ks[9], (E,), 0, N, dtype=jnp.int32)
    dst = jax.random.randint(ks[10], (E,), 0, N, dtype=jnp.int32)
    edge_index = jnp.stack([src, dst], axis=0)                  # [2, E]
    edge_attr = jax.random.normal(ks[11], (E, 3), jnp.float32)  # [E, 3]

    fwd = jax.jit(edge_gcn_lstm_forward)
    out = jax.block_until_ready(fwd(x, edge_index, edge_attr, raw))

    ref = jax.block_until_ready(reference_forward(x, edge_index, edge_attr, raw))
    assert out.shape == (E * O,)
    assert jnp.allclose(out, ref, rtol=1e-4, atol=1e-4), (out, ref)

    print("KERNEL_OK")
</pallas_src>

<mosaic_0001>
module attributes {stable_mosaic.version = 11 : i64} {
  func.func @edge_gcn_lstm_kernel(%arg0: memref<16x16xf32, #tpu.memory_space<vmem>>, %arg1: memref<16x1xf32, #tpu.memory_space<vmem>>, %arg2: memref<2x8xf32, #tpu.memory_space<vmem>>, %arg3: memref<8x2xi32, #tpu.memory_space<vmem>>, %arg4: memref<8x3xf32, #tpu.memory_space<vmem>>, %arg5: memref<52x128xf32, #tpu.memory_space<vmem>>, %arg6: memref<1x33xf32, #tpu.memory_space<vmem>>, %arg7: memref<1x8xf32, #tpu.memory_space<vmem>>) attributes {dimension_semantics = [], scalar_prefetch = 0 : i64, scratch_operands = 0 : i64, tpu.core_type = #tpu.core_type<tc>} {
    %c0 = arith.constant 0 : index
    %c0_0 = arith.constant 0 : index
    %0 = vector.load %arg2[%c0, %c0_0] : memref<2x8xf32, #tpu.memory_space<vmem>>, vector<1x8xf32>
    %c1 = arith.constant 1 : index
    %c0_1 = arith.constant 0 : index
    %1 = vector.load %arg2[%c1, %c0_1] : memref<2x8xf32, #tpu.memory_space<vmem>>, vector<1x8xf32>
    %c0_2 = arith.constant 0 : index
    %c0_3 = arith.constant 0 : index
    %2 = vector.load %arg1[%c0_2, %c0_3] : memref<16x1xf32, #tpu.memory_space<vmem>>, vector<16x1xf32>
    %3 = vector.broadcast %2 : vector<16x1xf32> to vector<16x8xf32>
    %4 = vector.broadcast %0 : vector<1x8xf32> to vector<16x8xf32>
    %5 = arith.mulf %3, %4 : vector<16x8xf32>
    %c0_4 = arith.constant 0 : index
    %c0_5 = arith.constant 0 : index
    %6 = vector.load %arg0[%c0_4, %c0_5] : memref<16x16xf32, #tpu.memory_space<vmem>>, vector<16x16xf32>
    %cst = arith.constant dense<0.000000e+00> : vector<16x8xf32>
    %7 = tpu.matmul %6, %5, %cst {dimension_numbers = #tpu.dot_dimension_numbers<[1], [0], [0], [1], [0, 0, 1, 1], [], []>} : vector<16x16xf32>, vector<16x8xf32>, vector<16x8xf32> -> vector<16x8xf32>
    %8 = vector.broadcast %1 : vector<1x8xf32> to vector<16x8xf32>
    %9 = arith.addf %7, %8 : vector<16x8xf32>
    %cst_6 = arith.constant 0.000000e+00 : f32
    %10 = vector.broadcast %cst_6 : f32 to vector<16x8xf32>
    %11 = arith.maximumf %9, %10 : vector<16x8xf32>
    %12 = tpu.iota {dimensions = array<i32: 1>} : vector<8x16xi32>
    %c0_7 = arith.constant 0 : index
    %c0_8 = arith.constant 0 : index
    %13 = vector.load %arg3[%c0_7, %c0_8] : memref<8x2xi32, #tpu.memory_space<vmem>>, vector<8x1xi32>
    %14 = vector.broadcast %13 : vector<8x1xi32> to vector<8x16xi32>
    %15 = arith.cmpi eq, %12, %14 : vector<8x16xi32>
    %16 = arith.extui %15 : vector<8x16xi1> to vector<8x16xi32>
    %17 = arith.sitofp %16 : vector<8x16xi32> to vector<8x16xf32>
    %c0_9 = arith.constant 0 : index
    %c1_10 = arith.constant 1 : index
    %18 = vector.load %arg3[%c0_9, %c1_10] : memref<8x2xi32, #tpu.memory_space<vmem>>, vector<8x1xi32>
    %19 = vector.broadcast %18 : vector<8x1xi32> to vector<8x16xi32>
    %20 = arith.cmpi eq, %12, %19 : vector<8x16xi32>
    %21 = arith.extui %20 : vector<8x16xi1> to vector<8x16xi32>
    %22 = arith.sitofp %21 : vector<8x16xi32> to vector<8x16xf32>
    %cst_11 = arith.constant dense<0.000000e+00> : vector<8x8xf32>
    %23 = tpu.matmul %17, %11, %cst_11 {dimension_numbers = #tpu.dot_dimension_numbers<[1], [0], [0], [1], [0, 0, 1, 1], [], []>} : vector<8x16xf32>, vector<16x8xf32>, vector<8x8xf32> -> vector<8x8xf32>
    %cst_12 = arith.constant dense<0.000000e+00> : vector<8x8xf32>
    %24 = tpu.matmul %22, %11, %cst_12 {dimension_numbers = #tpu.dot_dimension_numbers<[1], [0], [0], [1], [0, 0, 1, 1], [], []>} : vector<8x16xf32>, vector<16x8xf32>, vector<8x8xf32> -> vector<8x8xf32>
    %c0_13 = arith.constant 0 : index
    %c0_14 = arith.constant 0 : index
    %25 = vector.load %arg5[%c0_13, %c0_14] : memref<52x128xf32, #tpu.memory_space<vmem>>, vector<32x128xf32>
    %c32 = arith.constant 32 : index
    %c0_15 = arith.constant 0 : index
    %26 = vector.load %arg5[%c32, %c0_15] : memref<52x128xf32, #tpu.memory_space<vmem>>, vector<8x128xf32>
    %c40 = arith.constant 40 : index
    %c0_16 = arith.constant 0 : index
    %27 = vector.load %arg5[%c40, %c0_16] : memref<52x128xf32, #tpu.memory_space<vmem>>, vector<8x128xf32>
    %c48 = arith.constant 48 : index
    %c0_17 = arith.constant 0 : index
    %28 = vector.load %arg5[%c48, %c0_17] : memref<52x128xf32, #tpu.memory_space<vmem>>, vector<3x128xf32>
    %c51 = arith.constant 51 : index
    %c0_18 = arith.constant 0 : index
    %29 = vector.load %arg5[%c51, %c0_18] : memref<52x128xf32, #tpu.memory_space<vmem>>, vector<1x128xf32>
    %cst_19 = arith.constant dense<0.000000e+00> : vector<8x128xf32>
    %30 = tpu.matmul %23, %26, %cst_19 {dimension_numbers = #tpu.dot_dimension_numbers<[1], [0], [0], [1], [0, 0, 1, 1], [], []>} : vector<8x8xf32>, vector<8x128xf32>, vector<8x128xf32> -> vector<8x128xf32>
    %cst_20 = arith.constant dense<0.000000e+00> : vector<8x128xf32>
    %31 = tpu.matmul %24, %27, %cst_20 {dimension_numbers = #tpu.dot_dimension_numbers<[1], [0], [0], [1], [0, 0, 1, 1], [], []>} : vector<8x8xf32>, vector<8x128xf32>, vector<8x128xf32> -> vector<8x128xf32>
    %32 = arith.addf %30, %31 : vector<8x128xf32>
    %c0_21 = arith.constant 0 : index
    %c0_22 = arith.constant 0 : index
    %33 = vector.load %arg4[%c0_21, %c0_22] : memref<8x3xf32, #tpu.memory_space<vmem>>, vector<8x3xf32>
    %cst_23 = arith.constant dense<0.000000e+00> : vector<8x128xf32>
    %34 = tpu.matmul %33, %28, %cst_23 {dimension_numbers = #tpu.dot_dimension_numbers<[1], [0], [0], [1], [0, 0, 1, 1], [], []>} : vector<8x3xf32>, vector<3x128xf32>, vector<8x128xf32> -> vector<8x128xf32>
    %35 = arith.addf %32, %34 : vector<8x128xf32>
    %36 = vector.broadcast %29 : vector<1x128xf32> to vector<8x128xf32>
    %37 = arith.addf %35, %36 : vector<8x128xf32>
    %cst_24 = arith.constant 0.000000e+00 : f32
    %38 = vector.broadcast %cst_24 : f32 to vector<1x32xf32>
    %cst_25 = arith.constant 0.000000e+00 : f32
    %39 = vector.broadcast %cst_25 : f32 to vector<1x32xf32>
    %40 = vector.extract_strided_slice %37 {offsets = [0, 0], sizes = [1, 128], strides = [1, 1]} : vector<8x128xf32> to vector<1x128xf32>
    %cst_26 = arith.constant dense<0.000000e+00> : vector<1x128xf32>
    %41 = tpu.matmul %38, %25, %cst_26 {dimension_numbers = #tpu.dot_dimension_numbers<[1], [0], [0], [1], [0, 0, 1, 1], [], []>} : vector<1x32xf32>, vector<32x128xf32>, vector<1x128xf32> -> vector<1x128xf32>
    %42 = arith.addf %40, %41 : vector<1x128xf32>
    %43 = vector.extract_strided_slice %42 {offsets = [0, 0], sizes = [1, 32], strides = [1, 1]} : vector<1x128xf32> to vector<1x32xf32>
    %cst_27 = arith.constant 5.000000e-01 : f32
    %44 = vector.broadcast %cst_27 : f32 to vector<1x32xf32>
    %45 = arith.mulf %44, %43 : vector<1x32xf32>
    %46 = math.tanh %45 : vector<1x32xf32>
    %cst_28 = arith.constant 5.000000e-01 : f32
    %47 = vector.broadcast %cst_28 : f32 to vector<1x32xf32>
    %48 = arith.mulf %47, %46 : vector<1x32xf32>
    %cst_29 = arith.constant 5.000000e-01 : f32
    %49 = vector.broadcast %cst_29 : f32 to vector<1x32xf32>
    %50 = arith.addf %48, %49 : vector<1x32xf32>
    %51 = vector.extract_strided_slice %42 {offsets = [0, 32], sizes = [1, 32], strides = [1, 1]} : vector<1x128xf32> to vector<1x32xf32>
    %cst_30 = arith.constant 5.000000e-01 : f32
    %52 = vector.broadcast %cst_30 : f32 to vector<1x32xf32>
    %53 = arith.mulf %52, %51 : vector<1x32xf32>
    %54 = math.tanh %53 : vector<1x32xf32>
    %cst_31 = arith.constant 5.000000e-01 : f32
    %55 = vector.broadcast %cst_31 : f32 to vector<1x32xf32>
    %56 = arith.mulf %55, %54 : vector<1x32xf32>
    %cst_32 = arith.constant 5.000000e-01 : f32
    %57 = vector.broadcast %cst_32 : f32 to vector<1x32xf32>
    %58 = arith.addf %56, %57 : vector<1x32xf32>
    %59 = vector.extract_strided_slice %42 {offsets = [0, 64], sizes = [1, 32], strides = [1, 1]} : vector<1x128xf32> to vector<1x32xf32>
    %60 = math.tanh %59 : vector<1x32xf32>
    %61 = vector.extract_strided_slice %42 {offsets = [0, 96], sizes = [1, 32], strides = [1, 1]} : vector<1x128xf32> to vector<1x32xf32>
    %cst_33 = arith.constant 5.000000e-01 : f32
    %62 = vector.broadcast %cst_33 : f32 to vector<1x32xf32>
    %63 = arith.mulf %62, %61 : vector<1x32xf32>
    %64 = math.tanh %63 : vector<1x32xf32>
    %cst_34 = arith.constant 5.000000e-01 : f32
    %65 = vector.broadcast %cst_34 : f32 to vector<1x32xf32>
    %66 = arith.mulf %65, %64 : vector<1x32xf32>
    %cst_35 = arith.constant 5.000000e-01 : f32
    %67 = vector.broadcast %cst_35 : f32 to vector<1x32xf32>
    %68 = arith.addf %66, %67 : vector<1x32xf32>
    %69 = arith.mulf %58, %39 : vector<1x32xf32>
    %70 = arith.mulf %50, %60 : vector<1x32xf32>
    %71 = arith.addf %69, %70 : vector<1x32xf32>
    %72 = math.tanh %71 : vector<1x32xf32>
    %73 = arith.mulf %68, %72 : vector<1x32xf32>
    %74 = vector.extract_strided_slice %37 {offsets = [1, 0], sizes = [1, 128], strides = [1, 1]} : vector<8x128xf32> to vector<1x128xf32>
    %cst_36 = arith.constant dense<0.000000e+00> : vector<1x128xf32>
    %75 = tpu.matmul %73, %25, %cst_36 {dimension_numbers = #tpu.dot_dimension_numbers<[1], [0], [0], [1], [0, 0, 1, 1], [], []>} : vector<1x32xf32>, vector<32x128xf32>, vector<1x128xf32> -> vector<1x128xf32>
    %76 = arith.addf %74, %75 : vector<1x128xf32>
    %77 = vector.extract_strided_slice %76 {offsets = [0, 0], sizes = [1, 32], strides = [1, 1]} : vector<1x128xf32> to vector<1x32xf32>
    %cst_37 = arith.constant 5.000000e-01 : f32
    %78 = vector.broadcast %cst_37 : f32 to vector<1x32xf32>
    %79 = arith.mulf %78, %77 : vector<1x32xf32>
    %80 = math.tanh %79 : vector<1x32xf32>
    %cst_38 = arith.constant 5.000000e-01 : f32
    %81 = vector.broadcast %cst_38 : f32 to vector<1x32xf32>
    %82 = arith.mulf %81, %80 : vector<1x32xf32>
    %cst_39 = arith.constant 5.000000e-01 : f32
    %83 = vector.broadcast %cst_39 : f32 to vector<1x32xf32>
    %84 = arith.addf %82, %83 : vector<1x32xf32>
    %85 = vector.extract_strided_slice %76 {offsets = [0, 32], sizes = [1, 32], strides = [1, 1]} : vector<1x128xf32> to vector<1x32xf32>
    %cst_40 = arith.constant 5.000000e-01 : f32
    %86 = vector.broadcast %cst_40 : f32 to vector<1x32xf32>
    %87 = arith.mulf %86, %85 : vector<1x32xf32>
    %88 = math.tanh %87 : vector<1x32xf32>
    %cst_41 = arith.constant 5.000000e-01 : f32
    %89 = vector.broadcast %cst_41 : f32 to vector<1x32xf32>
    %90 = arith.mulf %89, %88 : vector<1x32xf32>
    %cst_42 = arith.constant 5.000000e-01 : f32
    %91 = vector.broadcast %cst_42 : f32 to vector<1x32xf32>
    %92 = arith.addf %90, %91 : vector<1x32xf32>
    %93 = vector.extract_strided_slice %76 {offsets = [0, 64], sizes = [1, 32], strides = [1, 1]} : vector<1x128xf32> to vector<1x32xf32>
    %94 = math.tanh %93 : vector<1x32xf32>
    %95 = vector.extract_strided_slice %76 {offsets = [0, 96], sizes = [1, 32], strides = [1, 1]} : vector<1x128xf32> to vector<1x32xf32>
    %cst_43 = arith.constant 5.000000e-01 : f32
    %96 = vector.broadcast %cst_43 : f32 to vector<1x32xf32>
    %97 = arith.mulf %96, %95 : vector<1x32xf32>
    %98 = math.tanh %97 : vector<1x32xf32>
    %cst_44 = arith.constant 5.000000e-01 : f32
    %99 = vector.broadcast %cst_44 : f32 to vector<1x32xf32>
    %100 = arith.mulf %99, %98 : vector<1x32xf32>
    %cst_45 = arith.constant 5.000000e-01 : f32
    %101 = vector.broadcast %cst_45 : f32 to vector<1x32xf32>
    %102 = arith.addf %100, %101 : vector<1x32xf32>
    %103 = arith.mulf %92, %71 : vector<1x32xf32>
    %104 = arith.mulf %84, %94 : vector<1x32xf32>
    %105 = arith.addf %103, %104 : vector<1x32xf32>
    %106 = math.tanh %105 : vector<1x32xf32>
    %107 = arith.mulf %102, %106 : vector<1x32xf32>
    %108 = vector.extract_strided_slice %37 {offsets = [2, 0], sizes = [1, 128], strides = [1, 1]} : vector<8x128xf32> to vector<1x128xf32>
    %cst_46 = arith.constant dense<0.000000e+00> : vector<1x128xf32>
    %109 = tpu.matmul %107, %25, %cst_46 {dimension_numbers = #tpu.dot_dimension_numbers<[1], [0], [0], [1], [0, 0, 1, 1], [], []>} : vector<1x32xf32>, vector<32x128xf32>, vector<1x128xf32> -> vector<1x128xf32>
    %110 = arith.addf %108, %109 : vector<1x128xf32>
    %111 = vector.extract_strided_slice %110 {offsets = [0, 0], sizes = [1, 32], strides = [1, 1]} : vector<1x128xf32> to vector<1x32xf32>
    %cst_47 = arith.constant 5.000000e-01 : f32
    %112 = vector.broadcast %cst_47 : f32 to vector<1x32xf32>
    %113 = arith.mulf %112, %111 : vector<1x32xf32>
    %114 = math.tanh %113 : vector<1x32xf32>
    %cst_48 = arith.constant 5.000000e-01 : f32
    %115 = vector.broadcast %cst_48 : f32 to vector<1x32xf32>
    %116 = arith.mulf %115, %114 : vector<1x32xf32>
    %cst_49 = arith.constant 5.000000e-01 : f32
    %117 = vector.broadcast %cst_49 : f32 to vector<1x32xf32>
    %118 = arith.addf %116, %117 : vector<1x32xf32>
    %119 = vector.extract_strided_slice %110 {offsets = [0, 32], sizes = [1, 32], strides = [1, 1]} : vector<1x128xf32> to vector<1x32xf32>
    %cst_50 = arith.constant 5.000000e-01 : f32
    %120 = vector.broadcast %cst_50 : f32 to vector<1x32xf32>
    %121 = arith.mulf %120, %119 : vector<1x32xf32>
    %122 = math.tanh %121 : vector<1x32xf32>
    %cst_51 = arith.constant 5.000000e-01 : f32
    %123 = vector.broadcast %cst_51 : f32 to vector<1x32xf32>
    %124 = arith.mulf %123, %122 : vector<1x32xf32>
    %cst_52 = arith.constant 5.000000e-01 : f32
    %125 = vector.broadcast %cst_52 : f32 to vector<1x32xf32>
    %126 = arith.addf %124, %125 : vector<1x32xf32>
    %127 = vector.extract_strided_slice %110 {offsets = [0, 64], sizes = [1, 32], strides = [1, 1]} : vector<1x128xf32> to vector<1x32xf32>
    %128 = math.tanh %127 : vector<1x32xf32>
    %129 = vector.extract_strided_slice %110 {offsets = [0, 96], sizes = [1, 32], strides = [1, 1]} : vector<1x128xf32> to vector<1x32xf32>
    %cst_53 = arith.constant 5.000000e-01 : f32
    %130 = vector.broadcast %cst_53 : f32 to vector<1x32xf32>
    %131 = arith.mulf %130, %129 : vector<1x32xf32>
    %132 = math.tanh %131 : vector<1x32xf32>
    %cst_54 = arith.constant 5.000000e-01 : f32
    %133 = vector.broadcast %cst_54 : f32 to vector<1x32xf32>
    %134 = arith.mulf %133, %132 : vector<1x32xf32>
    %cst_55 = arith.constant 5.000000e-01 : f32
    %135 = vector.broadcast %cst_55 : f32 to vector<1x32xf32>
    %136 = arith.addf %134, %135 : vector<1x32xf32>
    %137 = arith.mulf %126, %105 : vector<1x32xf32>
    %138 = arith.mulf %118, %128 : vector<1x32xf32>
    %139 = arith.addf %137, %138 : vector<1x32xf32>
    %140 = math.tanh %139 : vector<1x32xf32>
    %141 = arith.mulf %136, %140 : vector<1x32xf32>
    %142 = vector.extract_strided_slice %37 {offsets = [3, 0], sizes = [1, 128], strides = [1, 1]} : vector<8x128xf32> to vector<1x128xf32>
    %cst_56 = arith.constant dense<0.000000e+00> : vector<1x128xf32>
    %143 = tpu.matmul %141, %25, %cst_56 {dimension_numbers = #tpu.dot_dimension_numbers<[1], [0], [0], [1], [0, 0, 1, 1], [], []>} : vector<1x32xf32>, vector<32x128xf32>, vector<1x128xf32> -> vector<1x128xf32>
    %144 = arith.addf %142, %143 : vector<1x128xf32>
    %145 = vector.extract_strided_slice %144 {offsets = [0, 0], sizes = [1, 32], strides = [1, 1]} : vector<1x128xf32> to vector<1x32xf32>
    %cst_57 = arith.constant 5.000000e-01 : f32
    %146 = vector.broadcast %cst_57 : f32 to vector<1x32xf32>
    %147 = arith.mulf %146, %145 : vector<1x32xf32>
    %148 = math.tanh %147 : vector<1x32xf32>
    %cst_58 = arith.constant 5.000000e-01 : f32
    %149 = vector.broadcast %cst_58 : f32 to vector<1x32xf32>
    %150 = arith.mulf %149, %148 : vector<1x32xf32>
    %cst_59 = arith.constant 5.000000e-01 : f32
    %151 = vector.broadcast %cst_59 : f32 to vector<1x32xf32>
    %152 = arith.addf %150, %151 : vector<1x32xf32>
    %153 = vector.extract_strided_slice %144 {offsets = [0, 32], sizes = [1, 32], strides = [1, 1]} : vector<1x128xf32> to vector<1x32xf32>
    %cst_60 = arith.constant 5.000000e-01 : f32
    %154 = vector.broadcast %cst_60 : f32 to vector<1x32xf32>
    %155 = arith.mulf %154, %153 : vector<1x32xf32>
    %156 = math.tanh %155 : vector<1x32xf32>
    %cst_61 = arith.constant 5.000000e-01 : f32
    %157 = vector.broadcast %cst_61 : f32 to vector<1x32xf32>
    %158 = arith.mulf %157, %156 : vector<1x32xf32>
    %cst_62 = arith.constant 5.000000e-01 : f32
    %159 = vector.broadcast %cst_62 : f32 to vector<1x32xf32>
    %160 = arith.addf %158, %159 : vector<1x32xf32>
    %161 = vector.extract_strided_slice %144 {offsets = [0, 64], sizes = [1, 32], strides = [1, 1]} : vector<1x128xf32> to vector<1x32xf32>
    %162 = math.tanh %161 : vector<1x32xf32>
    %163 = vector.extract_strided_slice %144 {offsets = [0, 96], sizes = [1, 32], strides = [1, 1]} : vector<1x128xf32> to vector<1x32xf32>
    %cst_63 = arith.constant 5.000000e-01 : f32
    %164 = vector.broadcast %cst_63 : f32 to vector<1x32xf32>
    %165 = arith.mulf %164, %163 : vector<1x32xf32>
    %166 = math.tanh %165 : vector<1x32xf32>
    %cst_64 = arith.constant 5.000000e-01 : f32
    %167 = vector.broadcast %cst_64 : f32 to vector<1x32xf32>
    %168 = arith.mulf %167, %166 : vector<1x32xf32>
    %cst_65 = arith.constant 5.000000e-01 : f32
    %169 = vector.broadcast %cst_65 : f32 to vector<1x32xf32>
    %170 = arith.addf %168, %169 : vector<1x32xf32>
    %171 = arith.mulf %160, %139 : vector<1x32xf32>
    %172 = arith.mulf %152, %162 : vector<1x32xf32>
    %173 = arith.addf %171, %172 : vector<1x32xf32>
    %174 = math.tanh %173 : vector<1x32xf32>
    %175 = arith.mulf %170, %174 : vector<1x32xf32>
    %176 = vector.extract_strided_slice %37 {offsets = [4, 0], sizes = [1, 128], strides = [1, 1]} : vector<8x128xf32> to vector<1x128xf32>
    %cst_66 = arith.constant dense<0.000000e+00> : vector<1x128xf32>
    %177 = tpu.matmul %175, %25, %cst_66 {dimension_numbers = #tpu.dot_dimension_numbers<[1], [0], [0], [1], [0, 0, 1, 1], [], []>} : vector<1x32xf32>, vector<32x128xf32>, vector<1x128xf32> -> vector<1x128xf32>
    %178 = arith.addf %176, %177 : vector<1x128xf32>
    %179 = vector.extract_strided_slice %178 {offsets = [0, 0], sizes = [1, 32], strides = [1, 1]} : vector<1x128xf32> to vector<1x32xf32>
    %cst_67 = arith.constant 5.000000e-01 : f32
    %180 = vector.broadcast %cst_67 : f32 to vector<1x32xf32>
    %181 = arith.mulf %180, %179 : vector<1x32xf32>
    %182 = math.tanh %181 : vector<1x32xf32>
    %cst_68 = arith.constant 5.000000e-01 : f32
    %183 = vector.broadcast %cst_68 : f32 to vector<1x32xf32>
    %184 = arith.mulf %183, %182 : vector<1x32xf32>
    %cst_69 = arith.constant 5.000000e-01 : f32
    %185 = vector.broadcast %cst_69 : f32 to vector<1x32xf32>
    %186 = arith.addf %184, %185 : vector<1x32xf32>
    %187 = vector.extract_strided_slice %178 {offsets = [0, 32], sizes = [1, 32], strides = [1, 1]} : vector<1x128xf32> to vector<1x32xf32>
    %cst_70 = arith.constant 5.000000e-01 : f32
    %188 = vector.broadcast %cst_70 : f32 to vector<1x32xf32>
    %189 = arith.mulf %188, %187 : vector<1x32xf32>
    %190 = math.tanh %189 : vector<1x32xf32>
    %cst_71 = arith.constant 5.000000e-01 : f32
    %191 = vector.broadcast %cst_71 : f32 to vector<1x32xf32>
    %192 = arith.mulf %191, %190 : vector<1x32xf32>
    %cst_72 = arith.constant 5.000000e-01 : f32
    %193 = vector.broadcast %cst_72 : f32 to vector<1x32xf32>
    %194 = arith.addf %192, %193 : vector<1x32xf32>
    %195 = vector.extract_strided_slice %178 {offsets = [0, 64], sizes = [1, 32], strides = [1, 1]} : vector<1x128xf32> to vector<1x32xf32>
    %196 = math.tanh %195 : vector<1x32xf32>
    %197 = vector.extract_strided_slice %178 {offsets = [0, 96], sizes = [1, 32], strides = [1, 1]} : vector<1x128xf32> to vector<1x32xf32>
    %cst_73 = arith.constant 5.000000e-01 : f32
    %198 = vector.broadcast %cst_73 : f32 to vector<1x32xf32>
    %199 = arith.mulf %198, %197 : vector<1x32xf32>
    %200 = math.tanh %199 : vector<1x32xf32>
    %cst_74 = arith.constant 5.000000e-01 : f32
    %201 = vector.broadcast %cst_74 : f32 to vector<1x32xf32>
    %202 = arith.mulf %201, %200 : vector<1x32xf32>
    %cst_75 = arith.constant 5.000000e-01 : f32
    %203 = vector.broadcast %cst_75 : f32 to vector<1x32xf32>
    %204 = arith.addf %202, %203 : vector<1x32xf32>
    %205 = arith.mulf %194, %173 : vector<1x32xf32>
    %206 = arith.mulf %186, %196 : vector<1x32xf32>
    %207 = arith.addf %205, %206 : vector<1x32xf32>
    %208 = math.tanh %207 : vector<1x32xf32>
    %209 = arith.mulf %204, %208 : vector<1x32xf32>
    %210 = vector.extract_strided_slice %37 {offsets = [5, 0], sizes = [1, 128], strides = [1, 1]} : vector<8x128xf32> to vector<1x128xf32>
    %cst_76 = arith.constant dense<0.000000e+00> : vector<1x128xf32>
    %211 = tpu.matmul %209, %25, %cst_76 {dimension_numbers = #tpu.dot_dimension_numbers<[1], [0], [0], [1], [0, 0, 1, 1], [], []>} : vector<1x32xf32>, vector<32x128xf32>, vector<1x128xf32> -> vector<1x128xf32>
    %212 = arith.addf %210, %211 : vector<1x128xf32>
    %213 = vector.extract_strided_slice %212 {offsets = [0, 0], sizes = [1, 32], strides = [1, 1]} : vector<1x128xf32> to vector<1x32xf32>
    %cst_77 = arith.constant 5.000000e-01 : f32
    %214 = vector.broadcast %cst_77 : f32 to vector<1x32xf32>
    %215 = arith.mulf %214, %213 : vector<1x32xf32>
    %216 = math.tanh %215 : vector<1x32xf32>
    %cst_78 = arith.constant 5.000000e-01 : f32
    %217 = vector.broadcast %cst_78 : f32 to vector<1x32xf32>
    %218 = arith.mulf %217, %216 : vector<1x32xf32>
    %cst_79 = arith.constant 5.000000e-01 : f32
    %219 = vector.broadcast %cst_79 : f32 to vector<1x32xf32>
    %220 = arith.addf %218, %219 : vector<1x32xf32>
    %221 = vector.extract_strided_slice %212 {offsets = [0, 32], sizes = [1, 32], strides = [1, 1]} : vector<1x128xf32> to vector<1x32xf32>
    %cst_80 = arith.constant 5.000000e-01 : f32
    %222 = vector.broadcast %cst_80 : f32 to vector<1x32xf32>
    %223 = arith.mulf %222, %221 : vector<1x32xf32>
    %224 = math.tanh %223 : vector<1x32xf32>
    %cst_81 = arith.constant 5.000000e-01 : f32
    %225 = vector.broadcast %cst_81 : f32 to vector<1x32xf32>
    %226 = arith.mulf %225, %224 : vector<1x32xf32>
    %cst_82 = arith.constant 5.000000e-01 : f32
    %227 = vector.broadcast %cst_82 : f32 to vector<1x32xf32>
    %228 = arith.addf %226, %227 : vector<1x32xf32>
    %229 = vector.extract_strided_slice %212 {offsets = [0, 64], sizes = [1, 32], strides = [1, 1]} : vector<1x128xf32> to vector<1x32xf32>
    %230 = math.tanh %229 : vector<1x32xf32>
    %231 = vector.extract_strided_slice %212 {offsets = [0, 96], sizes = [1, 32], strides = [1, 1]} : vector<1x128xf32> to vector<1x32xf32>
    %cst_83 = arith.constant 5.000000e-01 : f32
    %232 = vector.broadcast %cst_83 : f32 to vector<1x32xf32>
    %233 = arith.mulf %232, %231 : vector<1x32xf32>
    %234 = math.tanh %233 : vector<1x32xf32>
    %cst_84 = arith.constant 5.000000e-01 : f32
    %235 = vector.broadcast %cst_84 : f32 to vector<1x32xf32>
    %236 = arith.mulf %235, %234 : vector<1x32xf32>
    %cst_85 = arith.constant 5.000000e-01 : f32
    %237 = vector.broadcast %cst_85 : f32 to vector<1x32xf32>
    %238 = arith.addf %236, %237 : vector<1x32xf32>
    %239 = arith.mulf %228, %207 : vector<1x32xf32>
    %240 = arith.mulf %220, %230 : vector<1x32xf32>
    %241 = arith.addf %239, %240 : vector<1x32xf32>
    %242 = math.tanh %241 : vector<1x32xf32>
    %243 = arith.mulf %238, %242 : vector<1x32xf32>
    %244 = vector.extract_strided_slice %37 {offsets = [6, 0], sizes = [1, 128], strides = [1, 1]} : vector<8x128xf32> to vector<1x128xf32>
    %cst_86 = arith.constant dense<0.000000e+00> : vector<1x128xf32>
    %245 = tpu.matmul %243, %25, %cst_86 {dimension_numbers = #tpu.dot_dimension_numbers<[1], [0], [0], [1], [0, 0, 1, 1], [], []>} : vector<1x32xf32>, vector<32x128xf32>, vector<1x128xf32> -> vector<1x128xf32>
    %246 = arith.addf %244, %245 : vector<1x128xf32>
    %247 = vector.extract_strided_slice %246 {offsets = [0, 0], sizes = [1, 32], strides = [1, 1]} : vector<1x128xf32> to vector<1x32xf32>
    %cst_87 = arith.constant 5.000000e-01 : f32
    %248 = vector.broadcast %cst_87 : f32 to vector<1x32xf32>
    %249 = arith.mulf %248, %247 : vector<1x32xf32>
    %250 = math.tanh %249 : vector<1x32xf32>
    %cst_88 = arith.constant 5.000000e-01 : f32
    %251 = vector.broadcast %cst_88 : f32 to vector<1x32xf32>
    %252 = arith.mulf %251, %250 : vector<1x32xf32>
    %cst_89 = arith.constant 5.000000e-01 : f32
    %253 = vector.broadcast %cst_89 : f32 to vector<1x32xf32>
    %254 = arith.addf %252, %253 : vector<1x32xf32>
    %255 = vector.extract_strided_slice %246 {offsets = [0, 32], sizes = [1, 32], strides = [1, 1]} : vector<1x128xf32> to vector<1x32xf32>
    %cst_90 = arith.constant 5.000000e-01 : f32
    %256 = vector.broadcast %cst_90 : f32 to vector<1x32xf32>
    %257 = arith.mulf %256, %255 : vector<1x32xf32>
    %258 = math.tanh %257 : vector<1x32xf32>
    %cst_91 = arith.constant 5.000000e-01 : f32
    %259 = vector.broadcast %cst_91 : f32 to vector<1x32xf32>
    %260 = arith.mulf %259, %258 : vector<1x32xf32>
    %cst_92 = arith.constant 5.000000e-01 : f32
    %261 = vector.broadcast %cst_92 : f32 to vector<1x32xf32>
    %262 = arith.addf %260, %261 : vector<1x32xf32>
    %263 = vector.extract_strided_slice %246 {offsets = [0, 64], sizes = [1, 32], strides = [1, 1]} : vector<1x128xf32> to vector<1x32xf32>
    %264 = math.tanh %263 : vector<1x32xf32>
    %265 = vector.extract_strided_slice %246 {offsets = [0, 96], sizes = [1, 32], strides = [1, 1]} : vector<1x128xf32> to vector<1x32xf32>
    %cst_93 = arith.constant 5.000000e-01 : f32
    %266 = vector.broadcast %cst_93 : f32 to vector<1x32xf32>
    %267 = arith.mulf %266, %265 : vector<1x32xf32>
    %268 = math.tanh %267 : vector<1x32xf32>
    %cst_94 = arith.constant 5.000000e-01 : f32
    %269 = vector.broadcast %cst_94 : f32 to vector<1x32xf32>
    %270 = arith.mulf %269, %268 : vector<1x32xf32>
    %cst_95 = arith.constant 5.000000e-01 : f32
    %271 = vector.broadcast %cst_95 : f32 to vector<1x32xf32>
    %272 = arith.addf %270, %271 : vector<1x32xf32>
    %273 = arith.mulf %262, %241 : vector<1x32xf32>
    %274 = arith.mulf %254, %264 : vector<1x32xf32>
    %275 = arith.addf %273, %274 : vector<1x32xf32>
    %276 = math.tanh %275 : vector<1x32xf32>
    %277 = arith.mulf %272, %276 : vector<1x32xf32>
    %278 = vector.extract_strided_slice %37 {offsets = [7, 0], sizes = [1, 128], strides = [1, 1]} : vector<8x128xf32> to vector<1x128xf32>
    %cst_96 = arith.constant dense<0.000000e+00> : vector<1x128xf32>
    %279 = tpu.matmul %277, %25, %cst_96 {dimension_numbers = #tpu.dot_dimension_numbers<[1], [0], [0], [1], [0, 0, 1, 1], [], []>} : vector<1x32xf32>, vector<32x128xf32>, vector<1x128xf32> -> vector<1x128xf32>
    %280 = arith.addf %278, %279 : vector<1x128xf32>
    %281 = vector.extract_strided_slice %280 {offsets = [0, 0], sizes = [1, 32], strides = [1, 1]} : vector<1x128xf32> to vector<1x32xf32>
    %cst_97 = arith.constant 5.000000e-01 : f32
    %282 = vector.broadcast %cst_97 : f32 to vector<1x32xf32>
    %283 = arith.mulf %282, %281 : vector<1x32xf32>
    %284 = math.tanh %283 : vector<1x32xf32>
    %cst_98 = arith.constant 5.000000e-01 : f32
    %285 = vector.broadcast %cst_98 : f32 to vector<1x32xf32>
    %286 = arith.mulf %285, %284 : vector<1x32xf32>
    %cst_99 = arith.constant 5.000000e-01 : f32
    %287 = vector.broadcast %cst_99 : f32 to vector<1x32xf32>
    %288 = arith.addf %286, %287 : vector<1x32xf32>
    %289 = vector.extract_strided_slice %280 {offsets = [0, 32], sizes = [1, 32], strides = [1, 1]} : vector<1x128xf32> to vector<1x32xf32>
    %cst_100 = arith.constant 5.000000e-01 : f32
    %290 = vector.broadcast %cst_100 : f32 to vector<1x32xf32>
    %291 = arith.mulf %290, %289 : vector<1x32xf32>
    %292 = math.tanh %291 : vector<1x32xf32>
    %cst_101 = arith.constant 5.000000e-01 : f32
    %293 = vector.broadcast %cst_101 : f32 to vector<1x32xf32>
    %294 = arith.mulf %293, %292 : vector<1x32xf32>
    %cst_102 = arith.constant 5.000000e-01 : f32
    %295 = vector.broadcast %cst_102 : f32 to vector<1x32xf32>
    %296 = arith.addf %294, %295 : vector<1x32xf32>
    %297 = vector.extract_strided_slice %280 {offsets = [0, 64], sizes = [1, 32], strides = [1, 1]} : vector<1x128xf32> to vector<1x32xf32>
    %298 = math.tanh %297 : vector<1x32xf32>
    %299 = vector.extract_strided_slice %280 {offsets = [0, 96], sizes = [1, 32], strides = [1, 1]} : vector<1x128xf32> to vector<1x32xf32>
    %cst_103 = arith.constant 5.000000e-01 : f32
    %300 = vector.broadcast %cst_103 : f32 to vector<1x32xf32>
    %301 = arith.mulf %300, %299 : vector<1x32xf32>
    %302 = math.tanh %301 : vector<1x32xf32>
    %cst_104 = arith.constant 5.000000e-01 : f32
    %303 = vector.broadcast %cst_104 : f32 to vector<1x32xf32>
    %304 = arith.mulf %303, %302 : vector<1x32xf32>
    %cst_105 = arith.constant 5.000000e-01 : f32
    %305 = vector.broadcast %cst_105 : f32 to vector<1x32xf32>
    %306 = arith.addf %304, %305 : vector<1x32xf32>
    %307 = arith.mulf %296, %275 : vector<1x32xf32>
    %308 = arith.mulf %288, %298 : vector<1x32xf32>
    %309 = arith.addf %307, %308 : vector<1x32xf32>
    %310 = math.tanh %309 : vector<1x32xf32>
    %311 = arith.mulf %306, %310 : vector<1x32xf32>
    %312 = tpu.concatenate %73, %107, %141, %175, %209, %243, %277, %311 in 0 : vector<1x32xf32>, vector<1x32xf32>, vector<1x32xf32>, vector<1x32xf32>, vector<1x32xf32>, vector<1x32xf32>, vector<1x32xf32>, vector<1x32xf32> -> vector<8x32xf32>
    %c0_106 = arith.constant 0 : index
    %c0_107 = arith.constant 0 : index
    %313 = vector.load %arg6[%c0_106, %c0_107] : memref<1x33xf32, #tpu.memory_space<vmem>>, vector<1x32xf32>
    %c0_108 = arith.constant 0 : index
    %c32_109 = arith.constant 32 : index
    %314 = vector.load %arg6[%c0_108, %c32_109] : memref<1x33xf32, #tpu.memory_space<vmem>>, vector<1x1xf32>
    %cst_110 = arith.constant dense<0.000000e+00> : vector<1x8xf32>
    %315 = tpu.matmul %313, %312, %cst_110 {dimension_numbers = #tpu.dot_dimension_numbers<[1], [1], [0], [0], [0, 0, 1, 0], [], []>} : vector<1x32xf32>, vector<8x32xf32>, vector<1x8xf32> -> vector<1x8xf32>
    %316 = vector.broadcast %314 : vector<1x1xf32> to vector<1x8xf32>
    %317 = arith.addf %315, %316 : vector<1x8xf32>
    %c0_111 = arith.constant 0 : index
    %c0_112 = arith.constant 0 : index
    %318 = vector.load %arg7[%c0_111, %c0_112] : memref<1x8xf32, #tpu.memory_space<vmem>>, vector<1x8xf32>
    tpu.vector_store %arg7[%c0_111, %c0_112], %317 {strides = array<i32>} : memref<1x8xf32, #tpu.memory_space<vmem>>, vector<1x8xf32>,
    return
  }
}

</mosaic_0001>

<llo_original>
// kernel: edge_gcn_lstm_forward.1
$region0: #{edge_gcn_lstm_forward.1}
  #allocation0 [shape = 'u32[]', space=smem, size = 0x4, offset = 0x4, fixed_abs, tag = 'smem constant byte address 0x4 - core index']
  #allocation1 [shape = 'u32[144,128]{1,0:T(1,128)}', space=vmem, size = 0x12000, scoped, tag = 'internal scratch']
  %s0 = inlined_call_operand.vmem [shape: f32[16,16], index: 0, kind: input, shape index: {}]
  %s1 = inlined_call_operand.vmem [shape: f32[16,1], index: 1, kind: input, shape index: {}]
  %s2 = inlined_call_operand.vmem [shape: f32[2,8], index: 2, kind: input, shape index: {}]
  %s3 = inlined_call_operand.vmem [shape: s32[8,2], index: 3, kind: input, shape index: {}]
  %s4 = inlined_call_operand.vmem [shape: f32[8,3], index: 4, kind: input, shape index: {}]
  %s5 = inlined_call_operand.vmem [shape: f32[52,128], index: 5, kind: input, shape index: {}]
  %s6 = inlined_call_operand.vmem [shape: f32[1,33], index: 6, kind: input, shape index: {}]
  %s7 = inlined_call_operand.hbm [shape: f32[1,8], index: 7, kind: output, shape index: {}]
  %s8 = sld [smem:[#allocation0]]
  $region38: #{edge_gcn_lstm_forward.1} parent=0
    _
  %s10 = ssub.s32 1, %s8
  %s11 = scalar_select 0, %s10, %s8
  $region1: #{edge_gcn_lstm_forward.1} parent=0
    #allocation2 [shape = 'u8[512]{0}', space=vmem, size = 0x400, scoped, tag = 'output window, operand 0, single buffered']
    #allocation3 [shape = 's32[1]{0}', space=sflag, size = 0x4, scoped, tag = 'scoped memory for edge_gcn_lstm_forward.1']
    %12 = vsyncpa [#allocation3], 0
    // Predicated region
    $region2: #{edge_gcn_lstm_forward.1} parent=1 // pred_check
      _
    $region3: #{edge_gcn_lstm_forward.1} parent=1 // pred_check_branch
      %14 = sbr.rel (0) target = $region5
    $region4: #{edge_gcn_lstm_forward.1} parent=1 // pred_region
      _
    $region5: #{edge_gcn_lstm_forward.1} parent=1 // pred_fallthru
      _
    // Predicated region
    $region6: #{edge_gcn_lstm_forward.1} parent=1 // pred_check
      _
    $region7: #{edge_gcn_lstm_forward.1} parent=1 // pred_check_branch
      %16 = sbr.rel (0) target = $region9
    $region8: #{edge_gcn_lstm_forward.1} parent=1 // pred_region
      _
    $region9: #{edge_gcn_lstm_forward.1} parent=1 // pred_fallthru
      _
    // Predicated region
    $region10: #{edge_gcn_lstm_forward.1} parent=1 // pred_check
      _
    $region11: #{edge_gcn_lstm_forward.1} parent=1 // pred_check_branch
      %18 = sbr.rel (0) target = $region13
    $region12: #{edge_gcn_lstm_forward.1} parent=1 // pred_region
      _
    $region13: #{edge_gcn_lstm_forward.1} parent=1 // pred_fallthru
      _
    // Predicated region
    $region14: #{edge_gcn_lstm_forward.1} parent=1 // pred_check
      _
    $region15: #{edge_gcn_lstm_forward.1} parent=1 // pred_check_branch
      %20 = sbr.rel (0) target = $region17
    $region16: #{edge_gcn_lstm_forward.1} parent=1 // pred_region
      _
    $region17: #{edge_gcn_lstm_forward.1} parent=1 // pred_fallthru
      _
    // Predicated region
    $region18: #{edge_gcn_lstm_forward.1} parent=1 // pred_check
      _
    $region19: #{edge_gcn_lstm_forward.1} parent=1 // pred_check_branch
      %22 = sbr.rel (0) target = $region21
    $region20: #{edge_gcn_lstm_forward.1} parent=1 // pred_region
      _
    $region21: #{edge_gcn_lstm_forward.1} parent=1 // pred_fallthru
      _
    // Predicated region
    $region22: #{edge_gcn_lstm_forward.1} parent=1 // pred_check
      _
    $region23: #{edge_gcn_lstm_forward.1} parent=1 // pred_check_branch
      %24 = sbr.rel (0) target = $region25
    $region24: #{edge_gcn_lstm_forward.1} parent=1 // pred_region
      _
    $region25: #{edge_gcn_lstm_forward.1} parent=1 // pred_fallthru
      _
    // Predicated region
    $region26: #{edge_gcn_lstm_forward.1} parent=1 // pred_check
      _
    $region27: #{edge_gcn_lstm_forward.1} parent=1 // pred_check_branch
      %26 = sbr.rel (0) target = $region29
    $region28: #{edge_gcn_lstm_forward.1} parent=1 // pred_region
      _
    $region29: #{edge_gcn_lstm_forward.1} parent=1 // pred_fallthru
      _
    %v27 = vld [vmem:[%s2] sm:$0x1]
    %v28 = vld [vmem:[%s2 + $0x1] sm:$0x1]
    %v29 = vld [vmem:[%s1] sm:$0xff]
    %v30 = vld [vmem:[%s1 + $0x8] sm:$0xff]
    %32 = vset.pattern.permute.xlu0 0
    %33 = vperm.xlu0 %32, %v29
    %v34 = vpop.permute.xlu0 %33
    %37 = vset.pattern.permute.xlu0 0
    %38 = vperm.xlu0 %37, %v30
    %v39 = vpop.permute.xlu0 %38
    %v41 = vlaneseq
    %v42 = vshrl.u32 %v41, 7
    %v43 = vsub.s32 0, %v42
    %v44 = vrot.slane %v27, %v43
    %v45 = vmul.f32 %v34, %v44
    %v46 = vmul.f32 %v39, %v44
    %v47 = vld [vmem:[%s0] sm:$0xff]
    %v48 = vld [vmem:[%s0 + $0x8] sm:$0xff]
    %v49 = vlaneseq
    %v50 = vshrl.u32 %v49, 7
    %v51 = vsub.s32 0, %v50
    %v52 = vrot.slane %v28, %v51
    %vm53 = vcmask 130048
    %v55 = vsel %vm53, %v47, 0
    %v58 = vsel %vm53, %v48, 0
    %60 = vmatprep.subr.mxu0 0.0
    %61 = vmatpush1.msra.mxu0 %v45
    %62 = vmatprep.subr.mxu0 0.0
    %63 = vmatpush1.msra.mxu0 %v46
    %64 = vmatprep.subr.mxu0 0.0
    %65 = vmatpush1.msra.mxu0 0.0
    %66 = vmatprep.subr.mxu0 0.0
    %67 = vmatpush1.msra.mxu0 0.0
    %68 = vmatprep.subr.mxu0 0.0
    %69 = vmatpush1.msra.mxu0 0.0
    %70 = vmatprep.subr.mxu0 0.0
    %71 = vmatpush1.msra.mxu0 0.0
    %72 = vmatprep.subr.mxu0 0.0
    %73 = vmatpush1.msra.mxu0 0.0
    %74 = vmatprep.subr.mxu0 0.0
    %75 = vmatpush1.msra.mxu0 0.0
    %76 = vmatprep.subr.mxu0 0.0
    %77 = vmatpush1.msra.mxu0 0.0
    %78 = vmatprep.subr.mxu0 0.0
    %79 = vmatpush1.msra.mxu0 0.0
    %80 = vmatprep.subr.mxu0 0.0
    %81 = vmatpush1.msra.mxu0 0.0
    %82 = vmatprep.subr.mxu0 0.0
    %83 = vmatpush1.msra.mxu0 0.0
    %84 = vmatprep.subr.mxu0 0.0
    %85 = vmatpush1.msra.mxu0 0.0
    %86 = vmatprep.subr.mxu0 0.0
    %87 = vmatpush1.msra.mxu0 0.0
    %88 = vmatprep.subr.mxu0 0.0
    %89 = vmatpush1.msra.mxu0 0.0
    %90 = vmatprep.subr.mxu0 0.0
    %91 = vmatpush1.msra.mxu0 0.0
    %92 = vmatprep.subr.mxu0 0.0
    %93 = vmatpush1.msra.mxu0 0.0
    %94 = vmatprep.subr.mxu0 0.0
    %95 = vmatpush1.msra.mxu0 0.0
    %96 = vmatprep.subr.mxu0 0.0
    %97 = vmatpush1.msra.mxu0 0.0
    %98 = vmatprep.subr.mxu0 0.0
    %99 = vmatpush1.msra.mxu0 0.0
    %100 = vmatprep.subr.mxu0 0.0
    %101 = vmatpush1.msra.mxu0 0.0
    %102 = vmatprep.subr.mxu0 0.0
    %103 = vmatpush1.msra.mxu0 0.0
    %104 = vmatprep.subr.mxu0 0.0
    %105 = vmatpush1.msra.mxu0 0.0
    %106 = vmatprep.subr.mxu0 0.0
    %107 = vmatpush1.msra.mxu0 0.0
    %108 = vmatprep.subr.mxu0 0.0
    %109 = vmatpush1.msra.mxu0 0.0
    %110 = vmatprep.subr.mxu0 0.0
    %111 = vmatpush1.msra.mxu0 0.0
    %112 = vmatprep.subr.mxu0 0.0
    %113 = vmatpush1.msra.mxu0 0.0
    %114 = vmatprep.subr.mxu0 0.0
    %115 = vmatpush1.msra.mxu0 0.0
    %116 = vmatprep.subr.mxu0 0.0
    %117 = vmatpush1.msra.mxu0 0.0
    %118 = vmatprep.subr.mxu0 0.0
    %119 = vmatpush1.msra.mxu0 0.0
    %120 = vmatprep.subr.mxu0 0.0
    %121 = vmatpush1.msra.mxu0 0.0
    %122 = vmatprep.subr.mxu0 0.0
    %123 = vmatpush1.msra.mxu0 0.0
    %124 = vmatprep.mubr.f32.mxu0 0.0
    %125 = vmatmul.mubr.f32.gmra.mrb[0].mxu0 %v55
    %v126 = vpop.f32.mrb[0].mxu0
    %v127 = vadd.f32 %v52, %v126
    %v128 = vpop.f32.mrb[0].mxu0
    %129 = vmatprep.mubr.f32.mxu0 0.0
    %130 = vmatmul.mubr.f32.gmra.mrb[0].mxu0 %v58
    %v131 = vpop.f32.mrb[0].mxu0
    %v132 = vadd.f32 %v52, %v131
    %v133 = vpop.f32.mrb[0].mxu0
    %134 = vdwg.mxu0
    %v135 = vmax.f32 %v127, 0.0
    %v136 = vmax.f32 %v132, 0.0
    %v137 = vlaneseq
    %v138 = vand.u32 %v137, 127
    %v139 = vld [vmem:[%s3] sm:$0xff]
    %140 = vset.pattern.permute.xlu0 0
    %141 = vperm.xlu0 %140, %v139
    %v142 = vpop.permute.xlu0 %141
    %vm143 = vcmp.eq.s32.totalorder %v138, %v142
    %v144 = vsel %vm143, 1, 0
    %v145 = vcvt.s32.f32 %v144
    %146 = vset.pattern.permute.xlu0 1
    %147 = vperm.xlu0 %146, %v139
    %v148 = vpop.permute.xlu0 %147
    %vm149 = vcmp.eq.s32.totalorder %v138, %v148
    %v150 = vsel %vm149, 1, 0
    %v151 = vcvt.s32.f32 %v150
    %v153 = vsel %vm53, %v145, 0
    %155 = vmatprep.subr.mxu0 0.0
    %156 = vmatpush1.msra.mxu0 %v135
    %157 = vmatprep.subr.mxu0 0.0
    %158 = vmatpush1.msra.mxu0 %v136
    %159 = vmatprep.subr.mxu0 0.0
    %160 = vmatpush1.msra.mxu0 0.0
    %161 = vmatprep.subr.mxu0 0.0
    %162 = vmatpush1.msra.mxu0 0.0
    %163 = vmatprep.subr.mxu0 0.0
    %164 = vmatpush1.msra.mxu0 0.0
    %165 = vmatprep.subr.mxu0 0.0
    %166 = vmatpush1.msra.mxu0 0.0
    %167 = vmatprep.subr.mxu0 0.0
    %168 = vmatpush1.msra.mxu0 0.0
    %169 = vmatprep.subr.mxu0 0.0
    %170 = vmatpush1.msra.mxu0 0.0
    %171 = vmatprep.subr.mxu0 0.0
    %172 = vmatpush1.msra.mxu0 0.0
    %173 = vmatprep.subr.mxu0 0.0
    %174 = vmatpush1.msra.mxu0 0.0
    %175 = vmatprep.subr.mxu0 0.0
    %176 = vmatpush1.msra.mxu0 0.0
    %177 = vmatprep.subr.mxu0 0.0
    %178 = vmatpush1.msra.mxu0 0.0
    %179 = vmatprep.subr.mxu0 0.0
    %180 = vmatpush1.msra.mxu0 0.0
    %181 = vmatprep.subr.mxu0 0.0
    %182 = vmatpush1.msra.mxu0 0.0
    %183 = vmatprep.subr.mxu0 0.0
    %184 = vmatpush1.msra.mxu0 0.0
    %185 = vmatprep.subr.mxu0 0.0
    %186 = vmatpush1.msra.mxu0 0.0
    %187 = vmatprep.subr.mxu0 0.0
    %188 = vmatpush1.msra.mxu0 0.0
    %189 = vmatprep.subr.mxu0 0.0
    %190 = vmatpush1.msra.mxu0 0.0
    %191 = vmatprep.subr.mxu0 0.0
    %192 = vmatpush1.msra.mxu0 0.0
    %193 = vmatprep.subr.mxu0 0.0
    %194 = vmatpush1.msra.mxu0 0.0
    %195 = vmatprep.subr.mxu0 0.0
    %196 = vmatpush1.msra.mxu0 0.0
    %197 = vmatprep.subr.mxu0 0.0
    %198 = vmatpush1.msra.mxu0 0.0
    %199 = vmatprep.subr.mxu0 0.0
    %200 = vmatpush1.msra.mxu0 0.0
    %201 = vmatprep.subr.mxu0 0.0
    %202 = vmatpush1.msra.mxu0 0.0
    %203 = vmatprep.subr.mxu0 0.0
    %204 = vmatpush1.msra.mxu0 0.0
    %205 = vmatprep.subr.mxu0 0.0
    %206 = vmatpush1.msra.mxu0 0.0
    %207 = vmatprep.subr.mxu0 0.0
    %208 = vmatpush1.msra.mxu0 0.0
    %209 = vmatprep.subr.mxu0 0.0
    %210 = vmatpush1.msra.mxu0 0.0
    %211 = vmatprep.subr.mxu0 0.0
    %212 = vmatpush1.msra.mxu0 0.0
    %213 = vmatprep.subr.mxu0 0.0
    %214 = vmatpush1.msra.mxu0 0.0
    %215 = vmatprep.subr.mxu0 0.0
    %216 = vmatpush1.msra.mxu0 0.0
    %217 = vmatprep.subr.mxu0 0.0
    %218 = vmatpush1.msra.mxu0 0.0
    %219 = vmatprep.mubr.f32.mxu0 0.0
    %220 = vmatmul.mubr.f32.gmra.mrb[0].mxu0 %v153
    %v221 = vpop.f32.mrb[0].mxu0
    %v222 = vadd.f32 0.0, %v221
    %v223 = vpop.f32.mrb[0].mxu0
    %224 = vdwg.mxu0
    %v226 = vsel %vm53, %v151, 0
    %228 = vmatprep.subr.mxu0 0.0
    %229 = vmatpush1.msra.mxu0 %v135
    %230 = vmatprep.subr.mxu0 0.0
    %231 = vmatpush1.msra.mxu0 %v136
    %232 = vmatprep.subr.mxu0 0.0
    %233 = vmatpush1.msra.mxu0 0.0
    %234 = vmatprep.subr.mxu0 0.0
    %235 = vmatpush1.msra.mxu0 0.0
    %236 = vmatprep.subr.mxu0 0.0
    %237 = vmatpush1.msra.mxu0 0.0
    %238 = vmatprep.subr.mxu0 0.0
    %239 = vmatpush1.msra.mxu0 0.0
    %240 = vmatprep.subr.mxu0 0.0
    %241 = vmatpush1.msra.mxu0 0.0
    %242 = vmatprep.subr.mxu0 0.0
    %243 = vmatpush1.msra.mxu0 0.0
    %244 = vmatprep.subr.mxu0 0.0
    %245 = vmatpush1.msra.mxu0 0.0
    %246 = vmatprep.subr.mxu0 0.0
    %247 = vmatpush1.msra.mxu0 0.0
    %248 = vmatprep.subr.mxu0 0.0
    %249 = vmatpush1.msra.mxu0 0.0
    %250 = vmatprep.subr.mxu0 0.0
    %251 = vmatpush1.msra.mxu0 0.0
    %252 = vmatprep.subr.mxu0 0.0
    %253 = vmatpush1.msra.mxu0 0.0
    %254 = vmatprep.subr.mxu0 0.0
    %255 = vmatpush1.msra.mxu0 0.0
    %256 = vmatprep.subr.mxu0 0.0
    %257 = vmatpush1.msra.mxu0 0.0
    %258 = vmatprep.subr.mxu0 0.0
    %259 = vmatpush1.msra.mxu0 0.0
    %260 = vmatprep.subr.mxu0 0.0
    %261 = vmatpush1.msra.mxu0 0.0
    %262 = vmatprep.subr.mxu0 0.0
    %263 = vmatpush1.msra.mxu0 0.0
    %264 = vmatprep.subr.mxu0 0.0
    %265 = vmatpush1.msra.mxu0 0.0
    %266 = vmatprep.subr.mxu0 0.0
    %267 = vmatpush1.msra.mxu0 0.0
    %268 = vmatprep.subr.mxu0 0.0
    %269 = vmatpush1.msra.mxu0 0.0
    %270 = vmatprep.subr.mxu0 0.0
    %271 = vmatpush1.msra.mxu0 0.0
    %272 = vmatprep.subr.mxu0 0.0
    %273 = vmatpush1.msra.mxu0 0.0
    %274 = vmatprep.subr.mxu0 0.0
    %275 = vmatpush1.msra.mxu0 0.0
    %276 = vmatprep.subr.mxu0 0.0
    %277 = vmatpush1.msra.mxu0 0.0
    %278 = vmatprep.subr.mxu0 0.0
    %279 = vmatpush1.msra.mxu0 0.0
    %280 = vmatprep.subr.mxu0 0.0
    %281 = vmatpush1.msra.mxu0 0.0
    %282 = vmatprep.subr.mxu0 0.0
    %283 = vmatpush1.msra.mxu0 0.0
    %284 = vmatprep.subr.mxu0 0.0
    %285 = vmatpush1.msra.mxu0 0.0
    %286 = vmatprep.subr.mxu0 0.0
    %287 = vmatpush1.msra.mxu0 0.0
    %288 = vmatprep.subr.mxu0 0.0
    %289 = vmatpush1.msra.mxu0 0.0
    %290 = vmatprep.subr.mxu0 0.0
    %291 = vmatpush1.msra.mxu0 0.0
    %292 = vmatprep.mubr.f32.mxu0 0.0
    %293 = vmatmul.mubr.f32.gmra.mrb[0].mxu0 %v226
    %v294 = vpop.f32.mrb[0].mxu0
    %v295 = vadd.f32 0.0, %v294
    %v296 = vpop.f32.mrb[0].mxu0
    %297 = vdwg.mxu0
    %v298 = vld [vmem:[%s5] sm:$0xff]
    %v299 = vld [vmem:[%s5 + $0x8] sm:$0xff]
    %v300 = vld [vmem:[%s5 + $0x10] sm:$0xff]
    %v301 = vld [vmem:[%s5 + $0x18] sm:$0xff]
    %v302 = vld [vmem:[%s5 + $0x20] sm:$0xff]
    %v303 = vld [vmem:[%s5 + $0x28] sm:$0xff]
    %v304 = vld [vmem:[%s5 + $0x30] sm:$0x7]
    %v305 = vld [vmem:[%s5 + $0x33] sm:$0x1]
    %vm306 = vcmask 64512
    %v308 = vsel %vm306, %v295, 0
    %310 = vmatprep.subr.mxu0 0.0
    %311 = vmatpush1.msra.mxu0 %v303
    %312 = vmatprep.subr.mxu0 0.0
    %313 = vmatpush1.msra.mxu0 0.0
    %314 = vmatprep.subr.mxu0 0.0
    %315 = vmatpush1.msra.mxu0 0.0
    %316 = vmatprep.subr.mxu0 0.0
    %317 = vmatpush1.msra.mxu0 0.0
    %318 = vmatprep.subr.mxu0 0.0
    %319 = vmatpush1.msra.mxu0 0.0
    %320 = vmatprep.subr.mxu0 0.0
    %321 = vmatpush1.msra.mxu0 0.0
    %322 = vmatprep.subr.mxu0 0.0
    %323 = vmatpush1.msra.mxu0 0.0
    %324 = vmatprep.subr.mxu0 0.0
    %325 = vmatpush1.msra.mxu0 0.0
    %326 = vmatprep.subr.mxu0 0.0
    %327 = vmatpush1.msra.mxu0 0.0
    %328 = vmatprep.subr.mxu0 0.0
    %329 = vmatpush1.msra.mxu0 0.0
    %330 = vmatprep.subr.mxu0 0.0
    %331 = vmatpush1.msra.mxu0 0.0
    %332 = vmatprep.subr.mxu0 0.0
    %333 = vmatpush1.msra.mxu0 0.0
    %334 = vmatprep.subr.mxu0 0.0
    %335 = vmatpush1.msra.mxu0 0.0
    %336 = vmatprep.subr.mxu0 0.0
    %337 = vmatpush1.msra.mxu0 0.0
    %338 = vmatprep.subr.mxu0 0.0
    %339 = vmatpush1.msra.mxu0 0.0
    %340 = vmatprep.subr.mxu0 0.0
    %341 = vmatpush1.msra.mxu0 0.0
    %342 = vmatprep.subr.mxu0 0.0
    %343 = vmatpush1.msra.mxu0 0.0
    %344 = vmatprep.subr.mxu0 0.0
    %345 = vmatpush1.msra.mxu0 0.0
    %346 = vmatprep.subr.mxu0 0.0
    %347 = vmatpush1.msra.mxu0 0.0
    %348 = vmatprep.subr.mxu0 0.0
    %349 = vmatpush1.msra.mxu0 0.0
    %350 = vmatprep.subr.mxu0 0.0
    %351 = vmatpush1.msra.mxu0 0.0
    %352 = vmatprep.subr.mxu0 0.0
    %353 = vmatpush1.msra.mxu0 0.0
    %354 = vmatprep.subr.mxu0 0.0
    %355 = vmatpush1.msra.mxu0 0.0
    %356 = vmatprep.subr.mxu0 0.0
    %357 = vmatpush1.msra.mxu0 0.0
    %358 = vmatprep.subr.mxu0 0.0
    %359 = vmatpush1.msra.mxu0 0.0
    %360 = vmatprep.subr.mxu0 0.0
    %361 = vmatpush1.msra.mxu0 0.0
    %362 = vmatprep.subr.mxu0 0.0
    %363 = vmatpush1.msra.mxu0 0.0
    %364 = vmatprep.subr.mxu0 0.0
    %365 = vmatpush1.msra.mxu0 0.0
    %366 = vmatprep.subr.mxu0 0.0
    %367 = vmatpush1.msra.mxu0 0.0
    %368 = vmatprep.subr.mxu0 0.0
    %369 = vmatpush1.msra.mxu0 0.0
    %370 = vmatprep.subr.mxu0 0.0
    %371 = vmatpush1.msra.mxu0 0.0
    %372 = vmatprep.subr.mxu0 0.0
    %373 = vmatpush1.msra.mxu0 0.0
    %374 = vmatprep.mubr.f32.mxu0 0.0
    %375 = vmatmul.mubr.f32.gmra.mrb[0].mxu0 %v308
    %v376 = vpop.f32.mrb[0].mxu0
    %v377 = vadd.f32 0.0, %v376
    %v378 = vpop.f32.mrb[0].mxu0
    %379 = vdwg.mxu0
    %v381 = vsel %vm306, %v222, 0
    %383 = vmatprep.subr.mxu0 0.0
    %384 = vmatpush1.msra.mxu0 %v302
    %385 = vmatprep.subr.mxu0 0.0
    %386 = vmatpush1.msra.mxu0 0.0
    %387 = vmatprep.subr.mxu0 0.0
    %388 = vmatpush1.msra.mxu0 0.0
    %389 = vmatprep.subr.mxu0 0.0
    %390 = vmatpush1.msra.mxu0 0.0
    %391 = vmatprep.subr.mxu0 0.0
    %392 = vmatpush1.msra.mxu0 0.0
    %393 = vmatprep.subr.mxu0 0.0
    %394 = vmatpush1.msra.mxu0 0.0
    %395 = vmatprep.subr.mxu0 0.0
    %396 = vmatpush1.msra.mxu0 0.0
    %397 = vmatprep.subr.mxu0 0.0
    %398 = vmatpush1.msra.mxu0 0.0
    %399 = vmatprep.subr.mxu0 0.0
    %400 = vmatpush1.msra.mxu0 0.0
    %401 = vmatprep.subr.mxu0 0.0
    %402 = vmatpush1.msra.mxu0 0.0
    %403 = vmatprep.subr.mxu0 0.0
    %404 = vmatpush1.msra.mxu0 0.0
    %405 = vmatprep.subr.mxu0 0.0
    %406 = vmatpush1.msra.mxu0 0.0
    %407 = vmatprep.subr.mxu0 0.0
    %408 = vmatpush1.msra.mxu0 0.0
    %409 = vmatprep.subr.mxu0 0.0
    %410 = vmatpush1.msra.mxu0 0.0
    %411 = vmatprep.subr.mxu0 0.0
    %412 = vmatpush1.msra.mxu0 0.0
    %413 = vmatprep.subr.mxu0 0.0
    %414 = vmatpush1.msra.mxu0 0.0
    %415 = vmatprep.subr.mxu0 0.0
    %416 = vmatpush1.msra.mxu0 0.0
    %417 = vmatprep.subr.mxu0 0.0
    %418 = vmatpush1.msra.mxu0 0.0
    %419 = vmatprep.subr.mxu0 0.0
    %420 = vmatpush1.msra.mxu0 0.0
    %421 = vmatprep.subr.mxu0 0.0
    %422 = vmatpush1.msra.mxu0 0.0
    %423 = vmatprep.subr.mxu0 0.0
    %424 = vmatpush1.msra.mxu0 0.0
    %425 = vmatprep.subr.mxu0 0.0
    %426 = vmatpush1.msra.mxu0 0.0
    %427 = vmatprep.subr.mxu0 0.0
    %428 = vmatpush1.msra.mxu0 0.0
    %429 = vmatprep.subr.mxu0 0.0
    %430 = vmatpush1.msra.mxu0 0.0
    %431 = vmatprep.subr.mxu0 0.0
    %432 = vmatpush1.msra.mxu0 0.0
    %433 = vmatprep.subr.mxu0 0.0
    %434 = vmatpush1.msra.mxu0 0.0
    %435 = vmatprep.subr.mxu0 0.0
    %436 = vmatpush1.msra.mxu0 0.0
    %437 = vmatprep.subr.mxu0 0.0
    %438 = vmatpush1.msra.mxu0 0.0
    %439 = vmatprep.subr.mxu0 0.0
    %440 = vmatpush1.msra.mxu0 0.0
    %441 = vmatprep.subr.mxu0 0.0
    %442 = vmatpush1.msra.mxu0 0.0
    %443 = vmatprep.subr.mxu0 0.0
    %444 = vmatpush1.msra.mxu0 0.0
    %445 = vmatprep.subr.mxu0 0.0
    %446 = vmatpush1.msra.mxu0 0.0
    %447 = vmatprep.mubr.f32.mxu0 0.0
    %448 = vmatmul.mubr.f32.gmra.mrb[0].mxu0 %v381
    %v449 = vpop.f32.mrb[0].mxu0
    %v450 = vadd.f32 %v377, %v449
    %v451 = vpop.f32.mrb[0].mxu0
    %452 = vdwg.mxu0
    %v453 = vld [vmem:[%s4] sm:$0xff]
    %vm454 = vcmask 23552
    %v456 = vsel %vm454, %v453, 0
    %vm458 = vcmask 1042432
    %v460 = vsel %vm458, %v304, 0
    %462 = vmatprep.subr.mxu0 0.0
    %463 = vmatpush1.msra.mxu0 %v460
    %464 = vmatprep.subr.mxu0 0.0
    %465 = vmatpush1.msra.mxu0 0.0
    %466 = vmatprep.subr.mxu0 0.0
    %467 = vmatpush1.msra.mxu0 0.0
    %468 = vmatprep.subr.mxu0 0.0
    %469 = vmatpush1.msra.mxu0 0.0
    %470 = vmatprep.subr.mxu0 0.0
    %471 = vmatpush1.msra.mxu0 0.0
    %472 = vmatprep.subr.mxu0 0.0
    %473 = vmatpush1.msra.mxu0 0.0
    %474 = vmatprep.subr.mxu0 0.0
    %475 = vmatpush1.msra.mxu0 0.0
    %476 = vmatprep.subr.mxu0 0.0
    %477 = vmatpush1.msra.mxu0 0.0
    %478 = vmatprep.subr.mxu0 0.0
    %479 = vmatpush1.msra.mxu0 0.0
    %480 = vmatprep.subr.mxu0 0.0
    %481 = vmatpush1.msra.mxu0 0.0
    %482 = vmatprep.subr.mxu0 0.0
    %483 = vmatpush1.msra.mxu0 0.0
    %484 = vmatprep.subr.mxu0 0.0
    %485 = vmatpush1.msra.mxu0 0.0
    %486 = vmatprep.subr.mxu0 0.0
    %487 = vmatpush1.msra.mxu0 0.0
    %488 = vmatprep.subr.mxu0 0.0
    %489 = vmatpush1.msra.mxu0 0.0
    %490 = vmatprep.subr.mxu0 0.0
    %491 = vmatpush1.msra.mxu0 0.0
    %492 = vmatprep.subr.mxu0 0.0
    %493 = vmatpush1.msra.mxu0 0.0
    %494 = vmatprep.subr.mxu0 0.0
    %495 = vmatpush1.msra.mxu0 0.0
    %496 = vmatprep.subr.mxu0 0.0
    %497 = vmatpush1.msra.mxu0 0.0
    %498 = vmatprep.subr.mxu0 0.0
    %499 = vmatpush1.msra.mxu0 0.0
    %500 = vmatprep.subr.mxu0 0.0
    %501 = vmatpush1.msra.mxu0 0.0
    %502 = vmatprep.subr.mxu0 0.0
    %503 = vmatpush1.msra.mxu0 0.0
    %504 = vmatprep.subr.mxu0 0.0
    %505 = vmatpush1.msra.mxu0 0.0
    %506 = vmatprep.subr.mxu0 0.0
    %507 = vmatpush1.msra.mxu0 0.0
    %508 = vmatprep.subr.mxu0 0.0
    %509 = vmatpush1.msra.mxu0 0.0
    %510 = vmatprep.subr.mxu0 0.0
    %511 = vmatpush1.msra.mxu0 0.0
    %512 = vmatprep.subr.mxu0 0.0
    %513 = vmatpush1.msra.mxu0 0.0
    %514 = vmatprep.subr.mxu0 0.0
    %515 = vmatpush1.msra.mxu0 0.0
    %516 = vmatprep.subr.mxu0 0.0
    %517 = vmatpush1.msra.mxu0 0.0
    %518 = vmatprep.subr.mxu0 0.0
    %519 = vmatpush1.msra.mxu0 0.0
    %520 = vmatprep.subr.mxu0 0.0
    %521 = vmatpush1.msra.mxu0 0.0
    %522 = vmatprep.subr.mxu0 0.0
    %523 = vmatpush1.msra.mxu0 0.0
    %524 = vmatprep.subr.mxu0 0.0
    %525 = vmatpush1.msra.mxu0 0.0
    %526 = vmatprep.mubr.f32.mxu0 0.0
    %527 = vmatmul.mubr.f32.gmra.mrb[0].mxu0 %v456
    %v528 = vpop.f32.mrb[0].mxu0
    %v529 = vadd.f32 0.0, %v528
    %v530 = vpop.f32.mrb[0].mxu0
    %531 = vdwg.mxu0
    %v532 = vadd.f32 %v450, %v529
    %v533 = vlaneseq
    %v534 = vshrl.u32 %v533, 7
    %v535 = vsub.s32 0, %v534
    %v536 = vrot.slane %v305, %v535
    %v537 = vadd.f32 %v532, %v536
    %vm538 = vcmask 261120
    %v540 = vsel %vm538, 0.0, 0
    %542 = vmatprep.subr.mxu0 0.0
    %543 = vmatpush1.msra.mxu0 %v298
    %544 = vmatprep.subr.mxu0 0.0
    %545 = vmatpush1.msra.mxu0 %v299
    %546 = vmatprep.subr.mxu0 0.0
    %547 = vmatpush1.msra.mxu0 %v300
    %548 = vmatprep.subr.mxu0 0.0
    %549 = vmatpush1.msra.mxu0 %v301
    %550 = vmatprep.subr.mxu0 0.0
    %551 = vmatpush1.msra.mxu0 0.0
    %552 = vmatprep.subr.mxu0 0.0
    %553 = vmatpush1.msra.mxu0 0.0
    %554 = vmatprep.subr.mxu0 0.0
    %555 = vmatpush1.msra.mxu0 0.0
    %556 = vmatprep.subr.mxu0 0.0
    %557 = vmatpush1.msra.mxu0 0.0
    %558 = vmatprep.subr.mxu0 0.0
    %559 = vmatpush1.msra.mxu0 0.0
    %560 = vmatprep.subr.mxu0 0.0
    %561 = vmatpush1.msra.mxu0 0.0
    %562 = vmatprep.subr.mxu0 0.0
    %563 = vmatpush1.msra.mxu0 0.0
    %564 = vmatprep.subr.mxu0 0.0
    %565 = vmatpush1.msra.mxu0 0.0
    %566 = vmatprep.subr.mxu0 0.0
    %567 = vmatpush1.msra.mxu0 0.0
    %568 = vmatprep.subr.mxu0 0.0
    %569 = vmatpush1.msra.mxu0 0.0
    %570 = vmatprep.subr.mxu0 0.0
    %571 = vmatpush1.msra.mxu0 0.0
    %572 = vmatprep.subr.mxu0 0.0
    %573 = vmatpush1.msra.mxu0 0.0
    %574 = vmatprep.subr.mxu0 0.0
    %575 = vmatpush1.msra.mxu0 0.0
    %576 = vmatprep.subr.mxu0 0.0
    %577 = vmatpush1.msra.mxu0 0.0
    %578 = vmatprep.subr.mxu0 0.0
    %579 = vmatpush1.msra.mxu0 0.0
    %580 = vmatprep.subr.mxu0 0.0
    %581 = vmatpush1.msra.mxu0 0.0
    %582 = vmatprep.subr.mxu0 0.0
    %583 = vmatpush1.msra.mxu0 0.0
    %584 = vmatprep.subr.mxu0 0.0
    %585 = vmatpush1.msra.mxu0 0.0
    %586 = vmatprep.subr.mxu0 0.0
    %587 = vmatpush1.msra.mxu0 0.0
    %588 = vmatprep.subr.mxu0 0.0
    %589 = vmatpush1.msra.mxu0 0.0
    %590 = vmatprep.subr.mxu0 0.0
    %591 = vmatpush1.msra.mxu0 0.0
    %592 = vmatprep.subr.mxu0 0.0
    %593 = vmatpush1.msra.mxu0 0.0
    %594 = vmatprep.subr.mxu0 0.0
    %595 = vmatpush1.msra.mxu0 0.0
    %596 = vmatprep.subr.mxu0 0.0
    %597 = vmatpush1.msra.mxu0 0.0
    %598 = vmatprep.subr.mxu0 0.0
    %599 = vmatpush1.msra.mxu0 0.0
    %600 = vmatprep.subr.mxu0 0.0
    %601 = vmatpush1.msra.mxu0 0.0
    %602 = vmatprep.subr.mxu0 0.0
    %603 = vmatpush1.msra.mxu0 0.0
    %604 = vmatprep.subr.mxu0 0.0
    %605 = vmatpush1.msra.mxu0 0.0
    %606 = vmatprep.mubr.f32.mxu0 0.0
    %607 = vmatmul.mubr.f32.gmra.mrb[0].mxu0 %v540
    %v608 = vpop.f32.mrb[0].mxu0
    %v609 = vadd.f32 0.0, %v608
    %v610 = vpop.f32.mrb[0].mxu0
    %611 = vdwg.mxu0
    %v612 = vadd.f32 %v537, %v609
    %v613 = vmul.f32 %v612, 0.5
    %v614 = vtanh.pop %v613
    %v615 = vmul.f32 %v614, 0.5
    %v616 = vadd.f32 %v615, 0.5
    %v617 = vtanh.pop %v612
    %v618 = vmul.f32 %v616, 0.0
    %620 = vrot.lane.b32.xlu0 %v617, 64
    %v621 = vpop.permute.xlu0 %620
    %v623 = vmul.f32 %v616, %v621
    %625 = vrot.lane.b32.xlu0 %v623, 32
    %v626 = vpop.permute.xlu0 %625
    %v628 = vadd.f32 %v618, %v626
    %v629 = vtanh.pop %v628
    %631 = vrot.lane.b32.xlu0 %v629, 64
    %v632 = vpop.permute.xlu0 %631
    %v634 = vmul.f32 %v616, %v632
    %636 = vrot.lane.b32.xlu0 %v634, 32
    %v637 = vpop.permute.xlu0 %636
    %v638 = vsel %vm538, %v637, 0
    %640 = vmatprep.subr.mxu0 0.0
    %641 = vmatpush1.msra.mxu0 %v298
    %642 = vmatprep.subr.mxu0 0.0
    %643 = vmatpush1.msra.mxu0 %v299
    %644 = vmatprep.subr.mxu0 0.0
    %645 = vmatpush1.msra.mxu0 %v300
    %646 = vmatprep.subr.mxu0 0.0
    %647 = vmatpush1.msra.mxu0 %v301
    %648 = vmatprep.subr.mxu0 0.0
    %649 = vmatpush1.msra.mxu0 0.0
    %650 = vmatprep.subr.mxu0 0.0
    %651 = vmatpush1.msra.mxu0 0.0
    %652 = vmatprep.subr.mxu0 0.0
    %653 = vmatpush1.msra.mxu0 0.0
    %654 = vmatprep.subr.mxu0 0.0
    %655 = vmatpush1.msra.mxu0 0.0
    %656 = vmatprep.subr.mxu0 0.0
    %657 = vmatpush1.msra.mxu0 0.0
    %658 = vmatprep.subr.mxu0 0.0
    %659 = vmatpush1.msra.mxu0 0.0
    %660 = vmatprep.subr.mxu0 0.0
    %661 = vmatpush1.msra.mxu0 0.0
    %662 = vmatprep.subr.mxu0 0.0
    %663 = vmatpush1.msra.mxu0 0.0
    %664 = vmatprep.subr.mxu0 0.0
    %665 = vmatpush1.msra.mxu0 0.0
    %666 = vmatprep.subr.mxu0 0.0
    %667 = vmatpush1.msra.mxu0 0.0
    %668 = vmatprep.subr.mxu0 0.0
    %669 = vmatpush1.msra.mxu0 0.0
    %670 = vmatprep.subr.mxu0 0.0
    %671 = vmatpush1.msra.mxu0 0.0
    %672 = vmatprep.subr.mxu0 0.0
    %673 = vmatpush1.msra.mxu0 0.0
    %674 = vmatprep.subr.mxu0 0.0
    %675 = vmatpush1.msra.mxu0 0.0
    %676 = vmatprep.subr.mxu0 0.0
    %677 = vmatpush1.msra.mxu0 0.0
    %678 = vmatprep.subr.mxu0 0.0
    %679 = vmatpush1.msra.mxu0 0.0
    %680 = vmatprep.subr.mxu0 0.0
    %681 = vmatpush1.msra.mxu0 0.0
    %682 = vmatprep.subr.mxu0 0.0
    %683 = vmatpush1.msra.mxu0 0.0
    %684 = vmatprep.subr.mxu0 0.0
    %685 = vmatpush1.msra.mxu0 0.0
    %686 = vmatprep.subr.mxu0 0.0
    %687 = vmatpush1.msra.mxu0 0.0
    %688 = vmatprep.subr.mxu0 0.0
    %689 = vmatpush1.msra.mxu0 0.0
    %690 = vmatprep.subr.mxu0 0.0
    %691 = vmatpush1.msra.mxu0 0.0
    %692 = vmatprep.subr.mxu0 0.0
    %693 = vmatpush1.msra.mxu0 0.0
    %694 = vmatprep.subr.mxu0 0.0
    %695 = vmatpush1.msra.mxu0 0.0
    %696 = vmatprep.subr.mxu0 0.0
    %697 = vmatpush1.msra.mxu0 0.0
    %698 = vmatprep.subr.mxu0 0.0
    %699 = vmatpush1.msra.mxu0 0.0
    %700 = vmatprep.subr.mxu0 0.0
    %701 = vmatpush1.msra.mxu0 0.0
    %702 = vmatprep.subr.mxu0 0.0
    %703 = vmatpush1.msra.mxu0 0.0
    %704 = vmatprep.mubr.f32.mxu0 0.0
    %705 = vmatmul.mubr.f32.gmra.mrb[0].mxu0 %v638
    %v706 = vpop.f32.mrb[0].mxu0
    %v707 = vadd.f32 0.0, %v706
    %v708 = vpop.f32.mrb[0].mxu0
    %709 = vdwg.mxu0
    %v711 = vrot.slane %v707, 7
    %v713 = vadd.f32 %v537, %v711
    %v714 = vmul.f32 %v713, 0.5
    %v715 = vtanh.pop %v714
    %v716 = vmul.f32 %v715, 0.5
    %v717 = vadd.f32 %v716, 0.5
    %v718 = vtanh.pop %v713
    %v720 = vrot.slane %v628, 7
    %v722 = vmul.f32 %v717, %v720
    %724 = vrot.lane.b32.xlu0 %v718, 64
    %v725 = vpop.permute.xlu0 %724
    %v727 = vmul.f32 %v717, %v725
    %729 = vrot.lane.b32.xlu0 %v727, 32
    %v730 = vpop.permute.xlu0 %729
    %v732 = vadd.f32 %v722, %v730
    %v733 = vtanh.pop %v732
    %735 = vrot.lane.b32.xlu0 %v733, 64
    %v736 = vpop.permute.xlu0 %735
    %v738 = vmul.f32 %v717, %v736
    %v740 = vrot.slane %v738, 1
    %741 = vrot.lane.b32.xlu0 %v740, 32
    %v742 = vpop.permute.xlu0 %741
    %v743 = vsel %vm538, %v742, 0
    %745 = vmatprep.subr.mxu0 0.0
    %746 = vmatpush1.msra.mxu0 %v298
    %747 = vmatprep.subr.mxu0 0.0
    %748 = vmatpush1.msra.mxu0 %v299
    %749 = vmatprep.subr.mxu0 0.0
    %750 = vmatpush1.msra.mxu0 %v300
    %751 = vmatprep.subr.mxu0 0.0
    %752 = vmatpush1.msra.mxu0 %v301
    %753 = vmatprep.subr.mxu0 0.0
    %754 = vmatpush1.msra.mxu0 0.0
    %755 = vmatprep.subr.mxu0 0.0
    %756 = vmatpush1.msra.mxu0 0.0
    %757 = vmatprep.subr.mxu0 0.0
    %758 = vmatpush1.msra.mxu0 0.0
    %759 = vmatprep.subr.mxu0 0.0
    %760 = vmatpush1.msra.mxu0 0.0
    %761 = vmatprep.subr.mxu0 0.0
    %762 = vmatpush1.msra.mxu0 0.0
    %763 = vmatprep.subr.mxu0 0.0
    %764 = vmatpush1.msra.mxu0 0.0
    %765 = vmatprep.subr.mxu0 0.0
    %766 = vmatpush1.msra.mxu0 0.0
    %767 = vmatprep.subr.mxu0 0.0
    %768 = vmatpush1.msra.mxu0 0.0
    %769 = vmatprep.subr.mxu0 0.0
    %770 = vmatpush1.msra.mxu0 0.0
    %771 = vmatprep.subr.mxu0 0.0
    %772 = vmatpush1.msra.mxu0 0.0
    %773 = vmatprep.subr.mxu0 0.0
    %774 = vmatpush1.msra.mxu0 0.0
    %775 = vmatprep.subr.mxu0 0.0
    %776 = vmatpush1.msra.mxu0 0.0
    %777 = vmatprep.subr.mxu0 0.0
    %778 = vmatpush1.msra.mxu0 0.0
    %779 = vmatprep.subr.mxu0 0.0
    %780 = vmatpush1.msra.mxu0 0.0
    %781 = vmatprep.subr.mxu0 0.0
    %782 = vmatpush1.msra.mxu0 0.0
    %783 = vmatprep.subr.mxu0 0.0
    %784 = vmatpush1.msra.mxu0 0.0
    %785 = vmatprep.subr.mxu0 0.0
    %786 = vmatpush1.msra.mxu0 0.0
    %787 = vmatprep.subr.mxu0 0.0
    %788 = vmatpush1.msra.mxu0 0.0
    %789 = vmatprep.subr.mxu0 0.0
    %790 = vmatpush1.msra.mxu0 0.0
    %791 = vmatprep.subr.mxu0 0.0
    %792 = vmatpush1.msra.mxu0 0.0
    %793 = vmatprep.subr.mxu0 0.0
    %794 = vmatpush1.msra.mxu0 0.0
    %795 = vmatprep.subr.mxu0 0.0
    %796 = vmatpush1.msra.mxu0 0.0
    %797 = vmatprep.subr.mxu0 0.0
    %798 = vmatpush1.msra.mxu0 0.0
    %799 = vmatprep.subr.mxu0 0.0
    %800 = vmatpush1.msra.mxu0 0.0
    %801 = vmatprep.subr.mxu0 0.0
    %802 = vmatpush1.msra.mxu0 0.0
    %803 = vmatprep.subr.mxu0 0.0
    %804 = vmatpush1.msra.mxu0 0.0
    %805 = vmatprep.subr.mxu0 0.0
    %806 = vmatpush1.msra.mxu0 0.0
    %807 = vmatprep.subr.mxu0 0.0
    %808 = vmatpush1.msra.mxu0 0.0
    %809 = vmatprep.mubr.f32.mxu0 0.0
    %810 = vmatmul.mubr.f32.gmra.mrb[0].mxu0 %v743
    %v811 = vpop.f32.mrb[0].mxu0
    %v812 = vadd.f32 0.0, %v811
    %v813 = vpop.f32.mrb[0].mxu0
    %814 = vdwg.mxu0
    %v816 = vrot.slane %v812, 6
    %v818 = vadd.f32 %v537, %v816
    %v819 = vmul.f32 %v818, 0.5
    %v820 = vtanh.pop %v819
    %v821 = vmul.f32 %v820, 0.5
    %v822 = vadd.f32 %v821, 0.5
    %v823 = vtanh.pop %v818
    %v825 = vrot.slane %v732, 7
    %v827 = vmul.f32 %v822, %v825
    %829 = vrot.lane.b32.xlu0 %v823, 64
    %v830 = vpop.permute.xlu0 %829
    %v832 = vmul.f32 %v822, %v830
    %834 = vrot.lane.b32.xlu0 %v832, 32
    %v835 = vpop.permute.xlu0 %834
    %v837 = vadd.f32 %v827, %v835
    %v838 = vtanh.pop %v837
    %840 = vrot.lane.b32.xlu0 %v838, 64
    %v841 = vpop.permute.xlu0 %840
    %v843 = vmul.f32 %v822, %v841
    %v845 = vrot.slane %v843, 2
    %846 = vrot.lane.b32.xlu0 %v845, 32
    %v847 = vpop.permute.xlu0 %846
    %v848 = vsel %vm538, %v847, 0
    %850 = vmatprep.subr.mxu0 0.0
    %851 = vmatpush1.msra.mxu0 %v298
    %852 = vmatprep.subr.mxu0 0.0
    %853 = vmatpush1.msra.mxu0 %v299
    %854 = vmatprep.subr.mxu0 0.0
    %855 = vmatpush1.msra.mxu0 %v300
    %856 = vmatprep.subr.mxu0 0.0
    %857 = vmatpush1.msra.mxu0 %v301
    %858 = vmatprep.subr.mxu0 0.0
    %859 = vmatpush1.msra.mxu0 0.0
    %860 = vmatprep.subr.mxu0 0.0
    %861 = vmatpush1.msra.mxu0 0.0
    %862 = vmatprep.subr.mxu0 0.0
    %863 = vmatpush1.msra.mxu0 0.0
    %864 = vmatprep.subr.mxu0 0.0
    %865 = vmatpush1.msra.mxu0 0.0
    %866 = vmatprep.subr.mxu0 0.0
    %867 = vmatpush1.msra.mxu0 0.0
    %868 = vmatprep.subr.mxu0 0.0
    %869 = vmatpush1.msra.mxu0 0.0
    %870 = vmatprep.subr.mxu0 0.0
    %871 = vmatpush1.msra.mxu0 0.0
    %872 = vmatprep.subr.mxu0 0.0
    %873 = vmatpush1.msra.mxu0 0.0
    %874 = vmatprep.subr.mxu0 0.0
    %875 = vmatpush1.msra.mxu0 0.0
    %876 = vmatprep.subr.mxu0 0.0
    %877 = vmatpush1.msra.mxu0 0.0
    %878 = vmatprep.subr.mxu0 0.0
    %879 = vmatpush1.msra.mxu0 0.0
    %880 = vmatprep.subr.mxu0 0.0
    %881 = vmatpush1.msra.mxu0 0.0
    %882 = vmatprep.subr.mxu0 0.0
    %883 = vmatpush1.msra.mxu0 0.0
    %884 = vmatprep.subr.mxu0 0.0
    %885 = vmatpush1.msra.mxu0 0.0
    %886 = vmatprep.subr.mxu0 0.0
    %887 = vmatpush1.msra.mxu0 0.0
    %888 = vmatprep.subr.mxu0 0.0
    %889 = vmatpush1.msra.mxu0 0.0
    %890 = vmatprep.subr.mxu0 0.0
    %891 = vmatpush1.msra.mxu0 0.0
    %892 = vmatprep.subr.mxu0 0.0
    %893 = vmatpush1.msra.mxu0 0.0
    %894 = vmatprep.subr.mxu0 0.0
    %895 = vmatpush1.msra.mxu0 0.0
    %896 = vmatprep.subr.mxu0 0.0
    %897 = vmatpush1.msra.mxu0 0.0
    %898 = vmatprep.subr.mxu0 0.0
    %899 = vmatpush1.msra.mxu0 0.0
    %900 = vmatprep.subr.mxu0 0.0
    %901 = vmatpush1.msra.mxu0 0.0
    %902 = vmatprep.subr.mxu0 0.0
    %903 = vmatpush1.msra.mxu0 0.0
    %904 = vmatprep.subr.mxu0 0.0
    %905 = vmatpush1.msra.mxu0 0.0
    %906 = vmatprep.subr.mxu0 0.0
    %907 = vmatpush1.msra.mxu0 0.0
    %908 = vmatprep.subr.mxu0 0.0
    %909 = vmatpush1.msra.mxu0 0.0
    %910 = vmatprep.subr.mxu0 0.0
    %911 = vmatpush1.msra.mxu0 0.0
    %912 = vmatprep.subr.mxu0 0.0
    %913 = vmatpush1.msra.mxu0 0.0
    %914 = vmatprep.mubr.f32.mxu0 0.0
    %915 = vmatmul.mubr.f32.gmra.mrb[0].mxu0 %v848
    %v916 = vpop.f32.mrb[0].mxu0
    %v917 = vadd.f32 0.0, %v916
    %v918 = vpop.f32.mrb[0].mxu0
    %919 = vdwg.mxu0
    %v921 = vrot.slane %v917, 5
    %v923 = vadd.f32 %v537, %v921
    %v924 = vmul.f32 %v923, 0.5
    %v925 = vtanh.pop %v924
    %v926 = vmul.f32 %v925, 0.5
    %v927 = vadd.f32 %v926, 0.5
    %v928 = vtanh.pop %v923
    %v930 = vrot.slane %v837, 7
    %v932 = vmul.f32 %v927, %v930
    %934 = vrot.lane.b32.xlu0 %v928, 64
    %v935 = vpop.permute.xlu0 %934
    %v937 = vmul.f32 %v927, %v935
    %939 = vrot.lane.b32.xlu0 %v937, 32
    %v940 = vpop.permute.xlu0 %939
    %v942 = vadd.f32 %v932, %v940
    %v943 = vtanh.pop %v942
    %945 = vrot.lane.b32.xlu0 %v943, 64
    %v946 = vpop.permute.xlu0 %945
    %v948 = vmul.f32 %v927, %v946
    %v950 = vrot.slane %v948, 3
    %951 = vrot.lane.b32.xlu0 %v950, 32
    %v952 = vpop.permute.xlu0 %951
    %v953 = vsel %vm538, %v952, 0
    %955 = vmatprep.subr.mxu0 0.0
    %956 = vmatpush1.msra.mxu0 %v298
    %957 = vmatprep.subr.mxu0 0.0
    %958 = vmatpush1.msra.mxu0 %v299
    %959 = vmatprep.subr.mxu0 0.0
    %960 = vmatpush1.msra.mxu0 %v300
    %961 = vmatprep.subr.mxu0 0.0
    %962 = vmatpush1.msra.mxu0 %v301
    %963 = vmatprep.subr.mxu0 0.0
    %964 = vmatpush1.msra.mxu0 0.0
    %965 = vmatprep.subr.mxu0 0.0
    %966 = vmatpush1.msra.mxu0 0.0
    %967 = vmatprep.subr.mxu0 0.0
    %968 = vmatpush1.msra.mxu0 0.0
    %969 = vmatprep.subr.mxu0 0.0
    %970 = vmatpush1.msra.mxu0 0.0
    %971 = vmatprep.subr.mxu0 0.0
    %972 = vmatpush1.msra.mxu0 0.0
    %973 = vmatprep.subr.mxu0 0.0
    %974 = vmatpush1.msra.mxu0 0.0
    %975 = vmatprep.subr.mxu0 0.0
    %976 = vmatpush1.msra.mxu0 0.0
    %977 = vmatprep.subr.mxu0 0.0
    %978 = vmatpush1.msra.mxu0 0.0
    %979 = vmatprep.subr.mxu0 0.0
    %980 = vmatpush1.msra.mxu0 0.0
    %981 = vmatprep.subr.mxu0 0.0
    %982 = vmatpush1.msra.mxu0 0.0
    %983 = vmatprep.subr.mxu0 0.0
    %984 = vmatpush1.msra.mxu0 0.0
    %985 = vmatprep.subr.mxu0 0.0
    %986 = vmatpush1.msra.mxu0 0.0
    %987 = vmatprep.subr.mxu0 0.0
    %988 = vmatpush1.msra.mxu0 0.0
    %989 = vmatprep.subr.mxu0 0.0
    %990 = vmatpush1.msra.mxu0 0.0
    %991 = vmatprep.subr.mxu0 0.0
    %992 = vmatpush1.msra.mxu0 0.0
    %993 = vmatprep.subr.mxu0 0.0
    %994 = vmatpush1.msra.mxu0 0.0
    %995 = vmatprep.subr.mxu0 0.0
    %996 = vmatpush1.msra.mxu0 0.0
    %997 = vmatprep.subr.mxu0 0.0
    %998 = vmatpush1.msra.mxu0 0.0
    %999 = vmatprep.subr.mxu0 0.0
    %1000 = vmatpush1.msra.mxu0 0.0
    %1001 = vmatprep.subr.mxu0 0.0
    %1002 = vmatpush1.msra.mxu0 0.0
    %1003 = vmatprep.subr.mxu0 0.0
    %1004 = vmatpush1.msra.mxu0 0.0
    %1005 = vmatprep.subr.mxu0 0.0
    %1006 = vmatpush1.msra.mxu0 0.0
    %1007 = vmatprep.subr.mxu0 0.0
    %1008 = vmatpush1.msra.mxu0 0.0
    %1009 = vmatprep.subr.mxu0 0.0
    %1010 = vmatpush1.msra.mxu0 0.0
    %1011 = vmatprep.subr.mxu0 0.0
    %1012 = vmatpush1.msra.mxu0 0.0
    %1013 = vmatprep.subr.mxu0 0.0
    %1014 = vmatpush1.msra.mxu0 0.0
    %1015 = vmatprep.subr.mxu0 0.0
    %1016 = vmatpush1.msra.mxu0 0.0
    %1017 = vmatprep.subr.mxu0 0.0
    %1018 = vmatpush1.msra.mxu0 0.0
    %1019 = vmatprep.mubr.f32.mxu0 0.0
    %1020 = vmatmul.mubr.f32.gmra.mrb[0].mxu0 %v953
    %v1021 = vpop.f32.mrb[0].mxu0
    %v1022 = vadd.f32 0.0, %v1021
    %v1023 = vpop.f32.mrb[0].mxu0
    %1024 = vdwg.mxu0
    %v1026 = vrot.slane %v1022, 4
    %v1028 = vadd.f32 %v537, %v1026
    %v1029 = vmul.f32 %v1028, 0.5
    %v1030 = vtanh.pop %v1029
    %v1031 = vmul.f32 %v1030, 0.5
    %v1032 = vadd.f32 %v1031, 0.5
    %v1033 = vtanh.pop %v1028
    %v1035 = vrot.slane %v942, 7
    %v1037 = vmul.f32 %v1032, %v1035
    %1039 = vrot.lane.b32.xlu0 %v1033, 64
    %v1040 = vpop.permute.xlu0 %1039
    %v1042 = vmul.f32 %v1032, %v1040
    %1044 = vrot.lane.b32.xlu0 %v1042, 32
    %v1045 = vpop.permute.xlu0 %1044
    %v1047 = vadd.f32 %v1037, %v1045
    %v1048 = vtanh.pop %v1047
    %1050 = vrot.lane.b32.xlu0 %v1048, 64
    %v1051 = vpop.permute.xlu0 %1050
    %v1053 = vmul.f32 %v1032, %v1051
    %v1055 = vrot.slane %v1053, 4
    %1056 = vrot.lane.b32.xlu0 %v1055, 32
    %v1057 = vpop.permute.xlu0 %1056
    %v1058 = vsel %vm538, %v1057, 0
    %1060 = vmatprep.subr.mxu0 0.0
    %1061 = vmatpush1.msra.mxu0 %v298
    %1062 = vmatprep.subr.mxu0 0.0
    %1063 = vmatpush1.msra.mxu0 %v299
    %1064 = vmatprep.subr.mxu0 0.0
    %1065 = vmatpush1.msra.mxu0 %v300
    %1066 = vmatprep.subr.mxu0 0.0
    %1067 = vmatpush1.msra.mxu0 %v301
    %1068 = vmatprep.subr.mxu0 0.0
    %1069 = vmatpush1.msra.mxu0 0.0
    %1070 = vmatprep.subr.mxu0 0.0
    %1071 = vmatpush1.msra.mxu0 0.0
    %1072 = vmatprep.subr.mxu0 0.0
    %1073 = vmatpush1.msra.mxu0 0.0
    %1074 = vmatprep.subr.mxu0 0.0
    %1075 = vmatpush1.msra.mxu0 0.0
    %1076 = vmatprep.subr.mxu0 0.0
    %1077 = vmatpush1.msra.mxu0 0.0
    %1078 = vmatprep.subr.mxu0 0.0
    %1079 = vmatpush1.msra.mxu0 0.0
    %1080 = vmatprep.subr.mxu0 0.0
    %1081 = vmatpush1.msra.mxu0 0.0
    %1082 = vmatprep.subr.mxu0 0.0
    %1083 = vmatpush1.msra.mxu0 0.0
    %1084 = vmatprep.subr.mxu0 0.0
    %1085 = vmatpush1.msra.mxu0 0.0
    %1086 = vmatprep.subr.mxu0 0.0
    %1087 = vmatpush1.msra.mxu0 0.0
    %1088 = vmatprep.subr.mxu0 0.0
    %1089 = vmatpush1.msra.mxu0 0.0
    %1090 = vmatprep.subr.mxu0 0.0
    %1091 = vmatpush1.msra.mxu0 0.0
    %1092 = vmatprep.subr.mxu0 0.0
    %1093 = vmatpush1.msra.mxu0 0.0
    %1094 = vmatprep.subr.mxu0 0.0
    %1095 = vmatpush1.msra.mxu0 0.0
    %1096 = vmatprep.subr.mxu0 0.0
    %1097 = vmatpush1.msra.mxu0 0.0
    %1098 = vmatprep.subr.mxu0 0.0
    %1099 = vmatpush1.msra.mxu0 0.0
    %1100 = vmatprep.subr.mxu0 0.0
    %1101 = vmatpush1.msra.mxu0 0.0
    %1102 = vmatprep.subr.mxu0 0.0
    %1103 = vmatpush1.msra.mxu0 0.0
    %1104 = vmatprep.subr.mxu0 0.0
    %1105 = vmatpush1.msra.mxu0 0.0
    %1106 = vmatprep.subr.mxu0 0.0
    %1107 = vmatpush1.msra.mxu0 0.0
    %1108 = vmatprep.subr.mxu0 0.0
    %1109 = vmatpush1.msra.mxu0 0.0
    %1110 = vmatprep.subr.mxu0 0.0
    %1111 = vmatpush1.msra.mxu0 0.0
    %1112 = vmatprep.subr.mxu0 0.0
    %1113 = vmatpush1.msra.mxu0 0.0
    %1114 = vmatprep.subr.mxu0 0.0
    %1115 = vmatpush1.msra.mxu0 0.0
    %1116 = vmatprep.subr.mxu0 0.0
    %1117 = vmatpush1.msra.mxu0 0.0
    %1118 = vmatprep.subr.mxu0 0.0
    %1119 = vmatpush1.msra.mxu0 0.0
    %1120 = vmatprep.subr.mxu0 0.0
    %1121 = vmatpush1.msra.mxu0 0.0
    %1122 = vmatprep.subr.mxu0 0.0
    %1123 = vmatpush1.msra.mxu0 0.0
    %1124 = vmatprep.mubr.f32.mxu0 0.0
    %1125 = vmatmul.mubr.f32.gmra.mrb[0].mxu0 %v1058
    %v1126 = vpop.f32.mrb[0].mxu0
    %v1127 = vadd.f32 0.0, %v1126
    %v1128 = vpop.f32.mrb[0].mxu0
    %1129 = vdwg.mxu0
    %v1131 = vrot.slane %v1127, 3
    %v1133 = vadd.f32 %v537, %v1131
    %v1134 = vmul.f32 %v1133, 0.5
    %v1135 = vtanh.pop %v1134
    %v1136 = vmul.f32 %v1135, 0.5
    %v1137 = vadd.f32 %v1136, 0.5
    %v1138 = vtanh.pop %v1133
    %v1140 = vrot.slane %v1047, 7
    %v1142 = vmul.f32 %v1137, %v1140
    %1144 = vrot.lane.b32.xlu0 %v1138, 64
    %v1145 = vpop.permute.xlu0 %1144
    %v1147 = vmul.f32 %v1137, %v1145
    %1149 = vrot.lane.b32.xlu0 %v1147, 32
    %v1150 = vpop.permute.xlu0 %1149
    %v1152 = vadd.f32 %v1142, %v1150
    %v1153 = vtanh.pop %v1152
    %1155 = vrot.lane.b32.xlu0 %v1153, 64
    %v1156 = vpop.permute.xlu0 %1155
    %v1158 = vmul.f32 %v1137, %v1156
    %v1160 = vrot.slane %v1158, 5
    %1161 = vrot.lane.b32.xlu0 %v1160, 32
    %v1162 = vpop.permute.xlu0 %1161
    %v1163 = vsel %vm538, %v1162, 0
    %1165 = vmatprep.subr.mxu0 0.0
    %1166 = vmatpush1.msra.mxu0 %v298
    %1167 = vmatprep.subr.mxu0 0.0
    %1168 = vmatpush1.msra.mxu0 %v299
    %1169 = vmatprep.subr.mxu0 0.0
    %1170 = vmatpush1.msra.mxu0 %v300
    %1171 = vmatprep.subr.mxu0 0.0
    %1172 = vmatpush1.msra.mxu0 %v301
    %1173 = vmatprep.subr.mxu0 0.0
    %1174 = vmatpush1.msra.mxu0 0.0
    %1175 = vmatprep.subr.mxu0 0.0
    %1176 = vmatpush1.msra.mxu0 0.0
    %1177 = vmatprep.subr.mxu0 0.0
    %1178 = vmatpush1.msra.mxu0 0.0
    %1179 = vmatprep.subr.mxu0 0.0
    %1180 = vmatpush1.msra.mxu0 0.0
    %1181 = vmatprep.subr.mxu0 0.0
    %1182 = vmatpush1.msra.mxu0 0.0
    %1183 = vmatprep.subr.mxu0 0.0
    %1184 = vmatpush1.msra.mxu0 0.0
    %1185 = vmatprep.subr.mxu0 0.0
    %1186 = vmatpush1.msra.mxu0 0.0
    %1187 = vmatprep.subr.mxu0 0.0
    %1188 = vmatpush1.msra.mxu0 0.0
    %1189 = vmatprep.subr.mxu0 0.0
    %1190 = vmatpush1.msra.mxu0 0.0
    %1191 = vmatprep.subr.mxu0 0.0
    %1192 = vmatpush1.msra.mxu0 0.0
    %1193 = vmatprep.subr.mxu0 0.0
    %1194 = vmatpush1.msra.mxu0 0.0
    %1195 = vmatprep.subr.mxu0 0.0
    %1196 = vmatpush1.msra.mxu0 0.0
    %1197 = vmatprep.subr.mxu0 0.0
    %1198 = vmatpush1.msra.mxu0 0.0
    %1199 = vmatprep.subr.mxu0 0.0
    %1200 = vmatpush1.msra.mxu0 0.0
    %1201 = vmatprep.subr.mxu0 0.0
    %1202 = vmatpush1.msra.mxu0 0.0
    %1203 = vmatprep.subr.mxu0 0.0
    %1204 = vmatpush1.msra.mxu0 0.0
    %1205 = vmatprep.subr.mxu0 0.0
    %1206 = vmatpush1.msra.mxu0 0.0
    %1207 = vmatprep.subr.mxu0 0.0
    %1208 = vmatpush1.msra.mxu0 0.0
    %1209 = vmatprep.subr.mxu0 0.0
    %1210 = vmatpush1.msra.mxu0 0.0
    %1211 = vmatprep.subr.mxu0 0.0
    %1212 = vmatpush1.msra.mxu0 0.0
    %1213 = vmatprep.subr.mxu0 0.0
    %1214 = vmatpush1.msra.mxu0 0.0
    %1215 = vmatprep.subr.mxu0 0.0
    %1216 = vmatpush1.msra.mxu0 0.0
    %1217 = vmatprep.subr.mxu0 0.0
    %1218 = vmatpush1.msra.mxu0 0.0
    %1219 = vmatprep.subr.mxu0 0.0
    %1220 = vmatpush1.msra.mxu0 0.0
    %1221 = vmatprep.subr.mxu0 0.0
    %1222 = vmatpush1.msra.mxu0 0.0
    %1223 = vmatprep.subr.mxu0 0.0
    %1224 = vmatpush1.msra.mxu0 0.0
    %1225 = vmatprep.subr.mxu0 0.0
    %1226 = vmatpush1.msra.mxu0 0.0
    %1227 = vmatprep.subr.mxu0 0.0
    %1228 = vmatpush1.msra.mxu0 0.0
    %1229 = vmatprep.mubr.f32.mxu0 0.0
    %1230 = vmatmul.mubr.f32.gmra.mrb[0].mxu0 %v1163
    %v1231 = vpop.f32.mrb[0].mxu0
    %v1232 = vadd.f32 0.0, %v1231
    %v1233 = vpop.f32.mrb[0].mxu0
    %1234 = vdwg.mxu0
    %v1236 = vrot.slane %v1232, 2
    %v1238 = vadd.f32 %v537, %v1236
    %v1239 = vmul.f32 %v1238, 0.5
    %v1240 = vtanh.pop %v1239
    %v1241 = vmul.f32 %v1240, 0.5
    %v1242 = vadd.f32 %v1241, 0.5
    %v1243 = vtanh.pop %v1238
    %v1245 = vrot.slane %v1152, 7
    %v1247 = vmul.f32 %v1242, %v1245
    %1249 = vrot.lane.b32.xlu0 %v1243, 64
    %v1250 = vpop.permute.xlu0 %1249
    %v1252 = vmul.f32 %v1242, %v1250
    %1254 = vrot.lane.b32.xlu0 %v1252, 32
    %v1255 = vpop.permute.xlu0 %1254
    %v1257 = vadd.f32 %v1247, %v1255
    %v1258 = vtanh.pop %v1257
    %1260 = vrot.lane.b32.xlu0 %v1258, 64
    %v1261 = vpop.permute.xlu0 %1260
    %v1263 = vmul.f32 %v1242, %v1261
    %v1265 = vrot.slane %v1263, 6
    %1266 = vrot.lane.b32.xlu0 %v1265, 32
    %v1267 = vpop.permute.xlu0 %1266
    %v1268 = vsel %vm538, %v1267, 0
    %1270 = vmatprep.subr.mxu0 0.0
    %1271 = vmatpush1.msra.mxu0 %v298
    %1272 = vmatprep.subr.mxu0 0.0
    %1273 = vmatpush1.msra.mxu0 %v299
    %1274 = vmatprep.subr.mxu0 0.0
    %1275 = vmatpush1.msra.mxu0 %v300
    %1276 = vmatprep.subr.mxu0 0.0
    %1277 = vmatpush1.msra.mxu0 %v301
    %1278 = vmatprep.subr.mxu0 0.0
    %1279 = vmatpush1.msra.mxu0 0.0
    %1280 = vmatprep.subr.mxu0 0.0
    %1281 = vmatpush1.msra.mxu0 0.0
    %1282 = vmatprep.subr.mxu0 0.0
    %1283 = vmatpush1.msra.mxu0 0.0
    %1284 = vmatprep.subr.mxu0 0.0
    %1285 = vmatpush1.msra.mxu0 0.0
    %1286 = vmatprep.subr.mxu0 0.0
    %1287 = vmatpush1.msra.mxu0 0.0
    %1288 = vmatprep.subr.mxu0 0.0
    %1289 = vmatpush1.msra.mxu0 0.0
    %1290 = vmatprep.subr.mxu0 0.0
    %1291 = vmatpush1.msra.mxu0 0.0
    %1292 = vmatprep.subr.mxu0 0.0
    %1293 = vmatpush1.msra.mxu0 0.0
    %1294 = vmatprep.subr.mxu0 0.0
    %1295 = vmatpush1.msra.mxu0 0.0
    %1296 = vmatprep.subr.mxu0 0.0
    %1297 = vmatpush1.msra.mxu0 0.0
    %1298 = vmatprep.subr.mxu0 0.0
    %1299 = vmatpush1.msra.mxu0 0.0
    %1300 = vmatprep.subr.mxu0 0.0
    %1301 = vmatpush1.msra.mxu0 0.0
    %1302 = vmatprep.subr.mxu0 0.0
    %1303 = vmatpush1.msra.mxu0 0.0
    %1304 = vmatprep.subr.mxu0 0.0
    %1305 = vmatpush1.msra.mxu0 0.0
    %1306 = vmatprep.subr.mxu0 0.0
    %1307 = vmatpush1.msra.mxu0 0.0
    %1308 = vmatprep.subr.mxu0 0.0
    %1309 = vmatpush1.msra.mxu0 0.0
    %1310 = vmatprep.subr.mxu0 0.0
    %1311 = vmatpush1.msra.mxu0 0.0
    %1312 = vmatprep.subr.mxu0 0.0
    %1313 = vmatpush1.msra.mxu0 0.0
    %1314 = vmatprep.subr.mxu0 0.0
    %1315 = vmatpush1.msra.mxu0 0.0
    %1316 = vmatprep.subr.mxu0 0.0
    %1317 = vmatpush1.msra.mxu0 0.0
    %1318 = vmatprep.subr.mxu0 0.0
    %1319 = vmatpush1.msra.mxu0 0.0
    %1320 = vmatprep.subr.mxu0 0.0
    %1321 = vmatpush1.msra.mxu0 0.0
    %1322 = vmatprep.subr.mxu0 0.0
    %1323 = vmatpush1.msra.mxu0 0.0
    %1324 = vmatprep.subr.mxu0 0.0
    %1325 = vmatpush1.msra.mxu0 0.0
    %1326 = vmatprep.subr.mxu0 0.0
    %1327 = vmatpush1.msra.mxu0 0.0
    %1328 = vmatprep.subr.mxu0 0.0
    %1329 = vmatpush1.msra.mxu0 0.0
    %1330 = vmatprep.subr.mxu0 0.0
    %1331 = vmatpush1.msra.mxu0 0.0
    %1332 = vmatprep.subr.mxu0 0.0
    %1333 = vmatpush1.msra.mxu0 0.0
    %1334 = vmatprep.mubr.f32.mxu0 0.0
    %1335 = vmatmul.mubr.f32.gmra.mrb[0].mxu0 %v1268
    %v1336 = vpop.f32.mrb[0].mxu0
    %v1337 = vadd.f32 0.0, %v1336
    %v1338 = vpop.f32.mrb[0].mxu0
    %1339 = vdwg.mxu0
    %v1341 = vrot.slane %v1337, 1
    %v1343 = vadd.f32 %v537, %v1341
    %v1344 = vmul.f32 %v1343, 0.5
    %v1345 = vtanh.pop %v1344
    %v1346 = vmul.f32 %v1345, 0.5
    %v1347 = vadd.f32 %v1346, 0.5
    %v1348 = vtanh.pop %v1343
    %v1350 = vrot.slane %v1257, 7
    %v1352 = vmul.f32 %v1347, %v1350
    %1354 = vrot.lane.b32.xlu0 %v1348, 64
    %v1355 = vpop.permute.xlu0 %1354
    %v1357 = vmul.f32 %v1347, %v1355
    %1359 = vrot.lane.b32.xlu0 %v1357, 32
    %v1360 = vpop.permute.xlu0 %1359
    %v1362 = vadd.f32 %v1352, %v1360
    %v1363 = vtanh.pop %v1362
    %1365 = vrot.lane.b32.xlu0 %v1363, 64
    %v1366 = vpop.permute.xlu0 %1365
    %v1368 = vmul.f32 %v1347, %v1366
    %vm1369 = vcmask 1040384
    %v1370 = vsel %vm1369, %v634, %v738
    %vm1371 = vcmask 1041408
    %v1372 = vsel %vm1371, %v1370, %v843
    %v1373 = vsel %vm458, %v1372, %v948
    %vm1374 = vcmask 1043456
    %v1375 = vsel %vm1374, %v1373, %v1053
    %vm1376 = vcmask 1044480
    %v1377 = vsel %vm1376, %v1375, %v1158
    %vm1378 = vcmask 1045504
    %v1379 = vsel %vm1378, %v1377, %v1263
    %vm1380 = vcmask 1046528
    %v1381 = vsel %vm1380, %v1379, %v1368
    %v1382 = vld [vmem:[%s6] sm:$0x1]
    %1384 = vset.pattern.permute.xlu0 32
    %1385 = vperm.xlu0 %1384, %v1382
    %v1386 = vpop.permute.xlu0 %1385
    %v1388 = vlaneseq
    %v1389 = vshrl.u32 %v1388, 7
    %v1390 = vsub.s32 0, %v1389
    %v1391 = vrot.slane %v1386, %v1390
    %1393 = vrot.lane.b32.xlu0 %v1381, 32
    %v1394 = vpop.permute.xlu0 %1393
    %v1395 = vsel %vm538, %v1382, 0
    %v1397 = vsel %vm538, %v1394, 0
    %1399 = vmatprep.subr.mxu0 0.0
    %1400 = vmatpush1.xpose.msra.mxu0 %v1397
    %1401 = vmatprep.subr.mxu0 0.0
    %1402 = vmatpush1.xpose.msra.mxu0 0.0
    %1403 = vmatprep.subr.mxu0 0.0
    %1404 = vmatpush1.xpose.msra.mxu0 0.0
    %1405 = vmatprep.subr.mxu0 0.0
    %1406 = vmatpush1.xpose.msra.mxu0 0.0
    %1407 = vmatprep.subr.mxu0 0.0
    %1408 = vmatpush1.xpose.msra.mxu0 0.0
    %1409 = vmatprep.subr.mxu0 0.0
    %1410 = vmatpush1.xpose.msra.mxu0 0.0
    %1411 = vmatprep.subr.mxu0 0.0
    %1412 = vmatpush1.xpose.msra.mxu0 0.0
    %1413 = vmatprep.subr.mxu0 0.0
    %1414 = vmatpush1.xpose.msra.mxu0 0.0
    %1415 = vmatprep.subr.mxu0 0.0
    %1416 = vmatpush1.xpose.msra.mxu0 0.0
    %1417 = vmatprep.subr.mxu0 0.0
    %1418 = vmatpush1.xpose.msra.mxu0 0.0
    %1419 = vmatprep.subr.mxu0 0.0
    %1420 = vmatpush1.xpose.msra.mxu0 0.0
    %1421 = vmatprep.subr.mxu0 0.0
    %1422 = vmatpush1.xpose.msra.mxu0 0.0
    %1423 = vmatprep.subr.mxu0 0.0
    %1424 = vmatpush1.xpose.msra.mxu0 0.0
    %1425 = vmatprep.subr.mxu0 0.0
    %1426 = vmatpush1.xpose.msra.mxu0 0.0
    %1427 = vmatprep.subr.mxu0 0.0
    %1428 = vmatpush1.xpose.msra.mxu0 0.0
    %1429 = vmatprep.subr.mxu0 0.0
    %1430 = vmatpush1.xpose.msra.mxu0 0.0
    %1431 = vmatprep.subr.mxu0 0.0
    %1432 = vmatpush1.xpose.msra.mxu0 0.0
    %1433 = vmatprep.subr.mxu0 0.0
    %1434 = vmatpush1.xpose.msra.mxu0 0.0
    %1435 = vmatprep.subr.mxu0 0.0
    %1436 = vmatpush1.xpose.msra.mxu0 0.0
    %1437 = vmatprep.subr.mxu0 0.0
    %1438 = vmatpush1.xpose.msra.mxu0 0.0
    %1439 = vmatprep.subr.mxu0 0.0
    %1440 = vmatpush1.xpose.msra.mxu0 0.0
    %1441 = vmatprep.subr.mxu0 0.0
    %1442 = vmatpush1.xpose.msra.mxu0 0.0
    %1443 = vmatprep.subr.mxu0 0.0
    %1444 = vmatpush1.xpose.msra.mxu0 0.0
    %1445 = vmatprep.subr.mxu0 0.0
    %1446 = vmatpush1.xpose.msra.mxu0 0.0
    %1447 = vmatprep.subr.mxu0 0.0
    %1448 = vmatpush1.xpose.msra.mxu0 0.0
    %1449 = vmatprep.subr.mxu0 0.0
    %1450 = vmatpush1.xpose.msra.mxu0 0.0
    %1451 = vmatprep.subr.mxu0 0.0
    %1452 = vmatpush1.xpose.msra.mxu0 0.0
    %1453 = vmatprep.subr.mxu0 0.0
    %1454 = vmatpush1.xpose.msra.mxu0 0.0
    %1455 = vmatprep.subr.mxu0 0.0
    %1456 = vmatpush1.xpose.msra.mxu0 0.0
    %1457 = vmatprep.subr.mxu0 0.0
    %1458 = vmatpush1.xpose.msra.mxu0 0.0
    %1459 = vmatprep.subr.mxu0 0.0
    %1460 = vmatpush1.xpose.msra.mxu0 0.0
    %1461 = vmatprep.subr.mxu0 0.0
    %1462 = vmatpush1.xpose.msra.mxu0 0.0
    %1463 = vmatprep.mubr.f32.mxu0 0.0
    %1464 = vmatmul.mubr.f32.gmra.mrb[0].mxu0 %v1395
    %v1465 = vpop.f32.mrb[0].mxu0
    %v1466 = vadd.f32 %v1391, %v1465
    %v1467 = vpop.f32.mrb[0].mxu0
    %1468 = vdwg.mxu0
    %vm1469 = vcmask 57344
    %1470 = vst.msk [vmem:[#allocation2] sm:$0x1] %vm1469, %v1466
    // Predicated region
    $region30: #{edge_gcn_lstm_forward.1} parent=1 // pred_check
      _
    $region31: #{edge_gcn_lstm_forward.1} parent=1 // pred_check_branch
      %1472 = sbr.rel (0) target = $region33
    $region32: #{edge_gcn_lstm_forward.1} parent=1 // pred_region
      %s1474 = ssub.s32 16, 16
      %1475 = vsyncadd [#allocation3], %s1474
      %s1477 = sshll.u32 [#allocation2], 4
      %s1478 = int_to_ptr.vmem [resolvable:$true] %s1477
      %1480 = dma.vmem_to_hbm [thread:$0]  %s1478, 16, %s7, [#allocation3]
    $region33: #{edge_gcn_lstm_forward.1} parent=1 // pred_fallthru
      _
    // Predicated region
    $region34: #{edge_gcn_lstm_forward.1} parent=1 // pred_check
      _
    $region35: #{edge_gcn_lstm_forward.1} parent=1 // pred_check_branch
      %1482 = sbr.rel (0) target = $region37
    $region36: #{edge_gcn_lstm_forward.1} parent=1 // pred_region
      %1483 = dma.done [#allocation3], 16
    $region37: #{edge_gcn_lstm_forward.1} parent=1 // pred_fallthru
      _
    %1484 = vsyncpa [#allocation3], 1

</llo_original>
